<compile_context>
chip_gen: v7x
topology: tpu7x:2x2x1
jax: 0.10.0
libtpu: 0.0.40
codegen_flags: <defaults>
</compile_context>

<pallas_src>
import jax
import jax.numpy as jnp
from jax.experimental import pallas as pl
from jax.experimental.pallas import tpu as pltpu
import numpy as np


def _round_up(x, m):
    return (x + m - 1) // m * m


def _extractor_chunk_kernel(sproj_ref, logith_ref, h0_ref, c0_ref, p0_ref,
                            w_hh_ref, b_g_ref, w_hn_ref,
                            h_out_ref, c_out_ref, p_out_ref,
                            h_carry, c_carry, p_carry):
    # Initialise the recurrent state from the caller-provided values at the first
    # time-chunk; afterwards it persists in VMEM scratch across grid steps.
    @pl.when(pl.program_id(0) == 0)
    def _():
        h_carry[...] = h0_ref[...]
        c_carry[...] = c0_ref[...]
        p_carry[...] = p0_ref[...]

    Tc = sproj_ref.shape[0]
    H = h_carry.shape[1]
    G = 4 * H

    # Lane mask: tanh on the g-gate lanes [2H, 3H), sigmoid on i/f/o lanes.
    lane = jax.lax.broadcasted_iota(jnp.int32, (1, G), 1)
    is_g_lane = jnp.logical_and(lane >= 2 * H, lane < 3 * H)

    hbar = h_carry[...]        # (Bp, H) f32
    cbar = c_carry[...]        # (Bp, H) f32
    p = p_carry[...]           # (Bp, 1) f32

    w_hh = w_hh_ref[...]       # (H, 4H) bf16, VMEM-resident
    b_g = b_g_ref[...]         # (1, 4H) f32
    w_hn = w_hn_ref[...]       # (1, H)  f32

    p_cols = []
    # Static Python loop over the time chunk: all slices / stores use static
    # indices (zero-cost views); the whole chunk is one scheduling region.
    for tc in range(Tc):
        sp = sproj_ref[tc]     # (Bp, 4H) f32: hoisted s_t @ W_ih (all 4 gates)
        lh = logith_ref[tc]    # (Bp, 1)  f32: hoisted h-side h2p logit (+ bias)

        # (p*s)@W_ih == p*(s@W_ih): one lane-dense (Bp,4H) MXU push per step.
        gates = (p * sp
                 + jnp.dot(hbar.astype(jnp.bfloat16), w_hh,
                           preferred_element_type=jnp.float32)
                 + b_g)

        # Two full-width EUP passes + lane-masked select, then slice per gate.
        act = jnp.where(is_g_lane, jnp.tanh(gates), jax.nn.sigmoid(gates))
        i_g = act[:, 0 * H:1 * H]
        f_g = act[:, 1 * H:2 * H]
        g_g = act[:, 2 * H:3 * H]
        o_g = act[:, 3 * H:4 * H]

        cbar = f_g * cbar + i_g * g_g          # f32 elementwise
        hbar = o_g * jnp.tanh(cbar)

        # h_new half of the h2p logit: VPU multiply + lane reduce (no MXU).
        logit = lh + jnp.sum(hbar * w_hn, axis=-1, keepdims=True)
        p = jax.nn.sigmoid(logit)

        h_out_ref[tc] = hbar
        c_out_ref[tc] = cbar
        p_cols.append(p)

    # One lane-dense (Bp, Tc) store per chunk instead of Tc single-lane stores.
    p_out_ref[0] = jnp.concatenate(p_cols, axis=-1)

    h_carry[...] = hbar
    c_carry[...] = cbar
    p_carry[...] = p


def extractor_cell_seq(s_seq, h_seq, h0_, c0_, p0, params, time_chunk=8):
    """Run the ExtractorCell recurrence over a whole sequence in ONE pallas_call.

    s_seq: (T, B, D), h_seq: (T, B, H), h0_/c0_: (B, H), p0: (B, 1).
    Returns per-step (h, c, p): (T, B, H), (T, B, H), (T, B, 1), float32.
    """
    w_ih_cat, w_hh_cat, b_g, w_h2p_h, w_h2p_hn, b_h2p = params
    T, B, D = s_seq.shape
    H = h_seq.shape[2]
    G = 4 * H

    # --- Parallel prologue (outside the serial recurrence) -------------------
    # Hoisted input projection, M = T*B rows (fills the MXU), bf16 operands,
    # f32 accumulation.
    s_proj = jnp.einsum('tbd,dg->tbg', s_seq.astype(jnp.bfloat16), w_ih_cat,
                        preferred_element_type=jnp.float32)          # (T,B,4H)
    # Hoisted h-side half of the h2p logit (depends only on the streamed h_t).
    logit_h = (jnp.sum(h_seq * w_h2p_h, axis=-1, keepdims=True)
               + b_h2p[0, 0])                                        # (T,B,1)

    Tc = max(1, min(time_chunk, T))
    Tp = _round_up(T, Tc)
    Bp = _round_up(B, 8)       # pad batch (sublane dim) to a multiple of 8
    NC = Tp // Tc

    pad_t, pad_b = Tp - T, Bp - B
    if pad_t or pad_b:
        s_proj = jnp.pad(s_proj, ((0, pad_t), (0, pad_b), (0, 0)))
        logit_h = jnp.pad(logit_h, ((0, pad_t), (0, pad_b), (0, 0)))
    if pad_b:
        h0_ = jnp.pad(h0_, ((0, pad_b), (0, 0)))
        c0_ = jnp.pad(c0_, ((0, pad_b), (0, 0)))
        p0 = jnp.pad(p0, ((0, pad_b), (0, 0)))

    out_shapes = (jax.ShapeDtypeStruct((Tp, Bp, H), jnp.float32),
                  jax.ShapeDtypeStruct((Tp, Bp, H), jnp.float32),
                  jax.ShapeDtypeStruct((NC, Bp, Tc), jnp.float32))

    chunk3 = lambda c: (c, 0, 0)
    const2 = lambda c: (0, 0)

    h_out, c_out, p_raw = pl.pallas_call(
        _extractor_chunk_kernel,
        out_shape=out_shapes,
        grid=(NC,),
        in_specs=[
            pl.BlockSpec((Tc, Bp, G), chunk3),   # S_proj      (per chunk)
            pl.BlockSpec((Tc, Bp, 1), chunk3),   # logit_h     (per chunk)
            pl.BlockSpec((Bp, H), const2),       # h0          (resident)
            pl.BlockSpec((Bp, H), const2),       # c0          (resident)
            pl.BlockSpec((Bp, 1), const2),       # p0          (resident)
            pl.BlockSpec((H, G), const2),        # W_hh  bf16  (resident)
            pl.BlockSpec((1, G), const2),        # LSTM bias   (resident)
            pl.BlockSpec((1, H), const2),        # h2p weight, h_new half (resident)
        ],
        out_specs=(pl.BlockSpec((Tc, Bp, H), chunk3),
                   pl.BlockSpec((Tc, Bp, H), chunk3),
                   pl.BlockSpec((1, Bp, Tc), chunk3)),
        scratch_shapes=[pltpu.VMEM((Bp, H), jnp.float32),   # hbar carry
                        pltpu.VMEM((Bp, H), jnp.float32),   # cbar carry
                        pltpu.VMEM((Bp, 1), jnp.float32)],  # p carry
        compiler_params=pltpu.CompilerParams(
            dimension_semantics=("arbitrary",)),  # recurrence is sequential
    )(s_proj, logit_h, h0_, c0_, p0, w_hh_cat, b_g, w_h2p_hn)

    # Reassemble p from its lane-dense (chunk, batch, time-in-chunk) layout.
    p_out = jnp.transpose(p_raw, (0, 2, 1)).reshape(Tp, Bp, 1)
    return h_out[:T, :B], c_out[:T, :B], p_out[:T, :B]


def extractor_cell(s, h, h_, c_, p, params):
    """Single-step API matching the PyTorch module's forward(s, h, h_, c_, p)."""
    hs, cs, ps = extractor_cell_seq(s[None], h[None], h_, c_, p, params,
                                    time_chunk=1)
    return hs[0], cs[0], ps[0]


def init_p(h0, hn, params):
    """Matches ExtractorCell.init_p (tiny; pure JAX, no kernel needed)."""
    _, _, _, w_h2p_h, w_h2p_hn, b_h2p = params
    logit = (jnp.sum(h0 * w_h2p_h, axis=-1, keepdims=True)
             + jnp.sum(hn * w_h2p_hn, axis=-1, keepdims=True) + b_h2p[0, 0])
    return jax.nn.sigmoid(logit)


def make_params(key, input_size, hidden_size):
    """Deterministic synthetic parameters, PyTorch-style uniform(-k, k) init,
    repacked into the kernel layout (gate-concatenated, pre-transposed)."""
    H = hidden_size
    k = 1.0 / np.sqrt(H)
    ks = jax.random.split(key, 6)
    w_ih = jax.random.uniform(ks[0], (4 * H, input_size), jnp.float32, -k, k)
    w_hh = jax.random.uniform(ks[1], (4 * H, H), jnp.float32, -k, k)
    b_ih = jax.random.uniform(ks[2], (4 * H,), jnp.float32, -k, k)
    b_hh = jax.random.uniform(ks[3], (4 * H,), jnp.float32, -k, k)
    k2 = 1.0 / np.sqrt(2 * H)
    w_h2p = jax.random.uniform(ks[4], (1, 2 * H), jnp.float32, -k2, k2)
    b_h2p = jax.random.uniform(ks[5], (1,), jnp.float32, -k2, k2)

    # Pre-transposed, gate-concatenated (x @ W layout), bf16 matmul operands.
    w_ih_cat = jnp.transpose(w_ih).astype(jnp.bfloat16)   # (D, 4H), gates i|f|g|o
    w_hh_cat = jnp.transpose(w_hh).astype(jnp.bfloat16)   # (H, 4H)
    b_g = (b_ih + b_hh).reshape(1, 4 * H)                 # fused LSTM bias, f32
    w_h2p_h = w_h2p[:, :H]                                # (1,H) applied to h
    w_h2p_hn = w_h2p[:, H:]                               # (1,H) applied to h_new
    return (w_ih_cat, w_hh_cat, b_g, w_h2p_h, w_h2p_hn, b_h2p.reshape(1, 1))


def reference_seq(s_seq, h_seq, h0_, c0_, p0, params):
    """Pure-JAX reference using the same hoisted bf16-operand / f32-accumulate math."""
    w_ih_cat, w_hh_cat, b_g, w_h2p_h, w_h2p_hn, b_h2p = params
    H = h0_.shape[1]
    s_proj = jnp.einsum('tbd,dg->tbg', s_seq.astype(jnp.bfloat16), w_ih_cat,
                        preferred_element_type=jnp.float32)
    logit_h = jnp.sum(h_seq * w_h2p_h, axis=-1, keepdims=True) + b_h2p[0, 0]
    hbar, cbar, p = h0_, c0_, p0
    hs, cs, ps = [], [], []
    for t in range(s_seq.shape[0]):
        gates = (p * s_proj[t]
                 + jnp.dot(hbar.astype(jnp.bfloat16), w_hh_cat,
                           preferred_element_type=jnp.float32)
                 + b_g)
        i_g = jax.nn.sigmoid(gates[:, 0 * H:1 * H])
        f_g = jax.nn.sigmoid(gates[:, 1 * H:2 * H])
        g_g = jnp.tanh(gates[:, 2 * H:3 * H])
        o_g = jax.nn.sigmoid(gates[:, 3 * H:4 * H])
        cbar = f_g * cbar + i_g * g_g
        hbar = o_g * jnp.tanh(cbar)
        logit = logit_h[t] + jnp.sum(hbar * w_h2p_hn, axis=-1, keepdims=True)
        p = jax.nn.sigmoid(logit)
        hs.append(hbar); cs.append(cbar); ps.append(p)
    return jnp.stack(hs), jnp.stack(cs), jnp.stack(ps)


if __name__ == "__main__":
    B, D, H, T = 2, 32, 32, 8   # batch, input_size, hidden_size, sequence length

    key = jax.random.PRNGKey(0)
    k_in, k_par = jax.random.split(key)
    ks = jax.random.split(k_in, 5)
    s_seq = jax.random.normal(ks[0], (T, B, D), jnp.float32)
    h_seq = jax.random.normal(ks[1], (T, B, H), jnp.float32)
    h0_ = jax.random.normal(ks[2], (B, H), jnp.float32)
    c0_ = jax.random.normal(ks[3], (B, H), jnp.float32)
    p0 = jax.nn.sigmoid(jax.random.normal(ks[4], (B, 1), jnp.float32))

    params = make_params(k_par, D, H)

    # Fused-sequence kernel (recurrence runs entirely inside one pallas_call).
    h_out, c_out, p_out = extractor_cell_seq(s_seq, h_seq, h0_, c0_, p0, params)
    jax.block_until_ready((h_out, c_out, p_out))

    h_ref, c_ref, p_ref = reference_seq(s_seq, h_seq, h0_, c0_, p0, params)
    assert np.allclose(np.asarray(h_out), np.asarray(h_ref), atol=3e-3, rtol=3e-3)
    assert np.allclose(np.asarray(c_out), np.asarray(c_ref), atol=3e-3, rtol=3e-3)
    assert np.allclose(np.asarray(p_out), np.asarray(p_ref), atol=3e-3, rtol=3e-3)

    # Single-step API (matches the original module's forward signature).
    h1, c1, p1 = extractor_cell(s_seq[0], h_seq[0], h0_, c0_, p0, params)
    jax.block_until_ready((h1, c1, p1))
    assert np.allclose(np.asarray(h1), np.asarray(h_ref[0]), atol=3e-3, rtol=3e-3)
    assert np.allclose(np.asarray(c1), np.asarray(c_ref[0]), atol=3e-3, rtol=3e-3)
    assert np.allclose(np.asarray(p1), np.asarray(p_ref[0]), atol=3e-3, rtol=3e-3)

    print("KERNEL_OK")
</pallas_src>

<mosaic_0001>
module attributes {stable_mosaic.version = 11 : i64} {
  func.func @_extractor_chunk_kernel(%arg0: i32, %arg1: memref<8x8x128xf32, #tpu.memory_space<vmem>>, %arg2: memref<8x8x1xf32, #tpu.memory_space<vmem>>, %arg3: memref<8x32xf32, #tpu.memory_space<vmem>>, %arg4: memref<8x32xf32, #tpu.memory_space<vmem>>, %arg5: memref<8x1xf32, #tpu.memory_space<vmem>>, %arg6: memref<32x128xbf16, #tpu.memory_space<vmem>>, %arg7: memref<1x128xf32, #tpu.memory_space<vmem>>, %arg8: memref<1x32xf32, #tpu.memory_space<vmem>>, %arg9: memref<8x8x32xf32, #tpu.memory_space<vmem>>, %arg10: memref<8x8x32xf32, #tpu.memory_space<vmem>>, %arg11: memref<1x8x8xf32, #tpu.memory_space<vmem>>, %arg12: memref<8x32xf32, #tpu.memory_space<vmem>>, %arg13: memref<8x32xf32, #tpu.memory_space<vmem>>, %arg14: memref<8x1xf32, #tpu.memory_space<vmem>>) attributes {dimension_semantics = [#tpu.dimension_semantics<arbitrary>], iteration_bounds = array<i64: 1>, scalar_prefetch = 0 : i64, scratch_operands = 3 : i64, tpu.core_type = #tpu.core_type<tc>, window_params = [{transform_indices = @transform_0, window_bounds = array<i64: 8, 8, 128>}, {transform_indices = @transform_1, window_bounds = array<i64: 8, 8, 1>}, {pipeline_mode = #tpu.pipeline_mode<synchronous>, transform_indices = @transform_2, window_bounds = array<i64: 8, 32>}, {pipeline_mode = #tpu.pipeline_mode<synchronous>, transform_indices = @transform_3, window_bounds = array<i64: 8, 32>}, {pipeline_mode = #tpu.pipeline_mode<synchronous>, transform_indices = @transform_4, window_bounds = array<i64: 8, 1>}, {pipeline_mode = #tpu.pipeline_mode<synchronous>, transform_indices = @transform_5, window_bounds = array<i64: 32, 128>}, {pipeline_mode = #tpu.pipeline_mode<synchronous>, transform_indices = @transform_6, window_bounds = array<i64: 1, 128>}, {pipeline_mode = #tpu.pipeline_mode<synchronous>, transform_indices = @transform_7, window_bounds = array<i64: 1, 32>}, {transform_indices = @transform_8, window_bounds = array<i64: 8, 8, 32>}, {transform_indices = @transform_9, window_bounds = array<i64: 8, 8, 32>}, {transform_indices = @transform_10, window_bounds = array<i64: 1, 8, 8>}]} {
    %c0_i32 = arith.constant 0 : i32
    %0 = arith.cmpi eq, %arg0, %c0_i32 : i32
    %1 = arith.extui %0 : i1 to i32
    %c0_i32_0 = arith.constant 0 : i32
    %2 = arith.cmpi ne, %1, %c0_i32_0 : i32
    scf.if %2 {
      %c0_141 = arith.constant 0 : index
      %c0_142 = arith.constant 0 : index
      %382 = vector.load %arg3[%c0_141, %c0_142] : memref<8x32xf32, #tpu.memory_space<vmem>>, vector<8x32xf32>
      %c0_143 = arith.constant 0 : index
      %c0_144 = arith.constant 0 : index
      %383 = vector.load %arg12[%c0_143, %c0_144] : memref<8x32xf32, #tpu.memory_space<vmem>>, vector<8x32xf32>
      tpu.vector_store %arg12[%c0_143, %c0_144], %382 {strides = array<i32>} : memref<8x32xf32, #tpu.memory_space<vmem>>, vector<8x32xf32>,
      %c0_145 = arith.constant 0 : index
      %c0_146 = arith.constant 0 : index
      %384 = vector.load %arg4[%c0_145, %c0_146] : memref<8x32xf32, #tpu.memory_space<vmem>>, vector<8x32xf32>
      %c0_147 = arith.constant 0 : index
      %c0_148 = arith.constant 0 : index
      %385 = vector.load %arg13[%c0_147, %c0_148] : memref<8x32xf32, #tpu.memory_space<vmem>>, vector<8x32xf32>
      tpu.vector_store %arg13[%c0_147, %c0_148], %384 {strides = array<i32>} : memref<8x32xf32, #tpu.memory_space<vmem>>, vector<8x32xf32>,
      %c0_149 = arith.constant 0 : index
      %c0_150 = arith.constant 0 : index
      %386 = vector.load %arg5[%c0_149, %c0_150] : memref<8x1xf32, #tpu.memory_space<vmem>>, vector<8x1xf32>
      %c0_151 = arith.constant 0 : index
      %c0_152 = arith.constant 0 : index
      %387 = vector.load %arg14[%c0_151, %c0_152] : memref<8x1xf32, #tpu.memory_space<vmem>>, vector<8x1xf32>
      tpu.vector_store %arg14[%c0_151, %c0_152], %386 {strides = array<i32>} : memref<8x1xf32, #tpu.memory_space<vmem>>, vector<8x1xf32>,
    } else {
    }
    %3 = tpu.iota {dimensions = array<i32: 1>} : vector<1x128xi32>
    %c64_i32 = arith.constant 64 : i32
    %4 = vector.broadcast %c64_i32 : i32 to vector<1x128xi32>
    %5 = arith.cmpi sge, %3, %4 : vector<1x128xi32>
    %c96_i32 = arith.constant 96 : i32
    %6 = vector.broadcast %c96_i32 : i32 to vector<1x128xi32>
    %7 = arith.cmpi slt, %3, %6 : vector<1x128xi32>
    %8 = arith.andi %5, %7 : vector<1x128xi1>
    %c0 = arith.constant 0 : index
    %c0_1 = arith.constant 0 : index
    %9 = vector.load %arg12[%c0, %c0_1] : memref<8x32xf32, #tpu.memory_space<vmem>>, vector<8x32xf32>
    %c0_2 = arith.constant 0 : index
    %c0_3 = arith.constant 0 : index
    %10 = vector.load %arg13[%c0_2, %c0_3] : memref<8x32xf32, #tpu.memory_space<vmem>>, vector<8x32xf32>
    %c0_4 = arith.constant 0 : index
    %c0_5 = arith.constant 0 : index
    %11 = vector.load %arg14[%c0_4, %c0_5] : memref<8x1xf32, #tpu.memory_space<vmem>>, vector<8x1xf32>
    %c0_6 = arith.constant 0 : index
    %c0_7 = arith.constant 0 : index
    %12 = vector.load %arg6[%c0_6, %c0_7] : memref<32x128xbf16, #tpu.memory_space<vmem>>, vector<32x128xbf16>
    %c0_8 = arith.constant 0 : index
    %c0_9 = arith.constant 0 : index
    %13 = vector.load %arg7[%c0_8, %c0_9] : memref<1x128xf32, #tpu.memory_space<vmem>>, vector<1x128xf32>
    %c0_10 = arith.constant 0 : index
    %c0_11 = arith.constant 0 : index
    %14 = vector.load %arg8[%c0_10, %c0_11] : memref<1x32xf32, #tpu.memory_space<vmem>>, vector<1x32xf32>
    %c0_12 = arith.constant 0 : index
    %c0_13 = arith.constant 0 : index
    %c0_14 = arith.constant 0 : index
    %15 = vector.load %arg1[%c0_12, %c0_13, %c0_14] : memref<8x8x128xf32, #tpu.memory_space<vmem>>, vector<1x8x128xf32>
    %16 = vector.shape_cast %15 : vector<1x8x128xf32> to vector<8x128xf32>
    %c0_15 = arith.constant 0 : index
    %c0_16 = arith.constant 0 : index
    %c0_17 = arith.constant 0 : index
    %17 = vector.load %arg2[%c0_15, %c0_16, %c0_17] : memref<8x8x1xf32, #tpu.memory_space<vmem>>, vector<1x8x1xf32>
    %18 = vector.shape_cast %17 : vector<1x8x1xf32> to vector<8x1xf32>
    %19 = vector.broadcast %11 : vector<8x1xf32> to vector<8x128xf32>
    %20 = arith.mulf %19, %16 : vector<8x128xf32>
    %21 = arith.truncf %9 : vector<8x32xf32> to vector<8x32xbf16>
    %cst = arith.constant dense<0.000000e+00> : vector<8x128xf32>
    %22 = tpu.matmul %21, %12, %cst {dimension_numbers = #tpu.dot_dimension_numbers<[1], [0], [0], [1], [0, 0, 1, 1], [], []>} : vector<8x32xbf16>, vector<32x128xbf16>, vector<8x128xf32> -> vector<8x128xf32>
    %23 = arith.addf %20, %22 : vector<8x128xf32>
    %24 = vector.broadcast %13 : vector<1x128xf32> to vector<8x128xf32>
    %25 = arith.addf %23, %24 : vector<8x128xf32>
    %26 = math.tanh %25 : vector<8x128xf32>
    %27 = arith.negf %25 : vector<8x128xf32>
    %28 = math.exp %27 : vector<8x128xf32>
    %cst_18 = arith.constant 1.000000e+00 : f32
    %29 = vector.broadcast %cst_18 : f32 to vector<8x128xf32>
    %30 = arith.addf %29, %28 : vector<8x128xf32>
    %31 = arith.divf %29, %30 : vector<8x128xf32>
    %32 = vector.shape_cast %8 : vector<1x128xi1> to vector<1x128xi1>
    %33 = vector.broadcast %32 : vector<1x128xi1> to vector<8x128xi1>
    %34 = arith.select %33, %26, %31 : vector<8x128xi1>, vector<8x128xf32>
    %35 = vector.extract_strided_slice %34 {offsets = [0, 0], sizes = [8, 32], strides = [1, 1]} : vector<8x128xf32> to vector<8x32xf32>
    %36 = vector.extract_strided_slice %34 {offsets = [0, 32], sizes = [8, 32], strides = [1, 1]} : vector<8x128xf32> to vector<8x32xf32>
    %37 = vector.extract_strided_slice %34 {offsets = [0, 64], sizes = [8, 32], strides = [1, 1]} : vector<8x128xf32> to vector<8x32xf32>
    %38 = vector.extract_strided_slice %34 {offsets = [0, 96], sizes = [8, 32], strides = [1, 1]} : vector<8x128xf32> to vector<8x32xf32>
    %39 = arith.mulf %36, %10 : vector<8x32xf32>
    %40 = arith.mulf %35, %37 : vector<8x32xf32>
    %41 = arith.addf %39, %40 : vector<8x32xf32>
    %42 = math.tanh %41 : vector<8x32xf32>
    %43 = arith.mulf %38, %42 : vector<8x32xf32>
    %44 = vector.broadcast %14 : vector<1x32xf32> to vector<8x32xf32>
    %45 = arith.mulf %43, %44 : vector<8x32xf32>
    %cst_19 = arith.constant dense<0.000000e+00> : vector<8xf32>
    %46 = vector.multi_reduction <add>, %45, %cst_19 [1] : vector<8x32xf32> to vector<8xf32>
    %47 = vector.shape_cast %46 : vector<8xf32> to vector<8x1xf32>
    %48 = arith.addf %18, %47 : vector<8x1xf32>
    %49 = arith.negf %48 : vector<8x1xf32>
    %50 = math.exp %49 : vector<8x1xf32>
    %cst_20 = arith.constant 1.000000e+00 : f32
    %51 = vector.broadcast %cst_20 : f32 to vector<8x1xf32>
    %52 = arith.addf %51, %50 : vector<8x1xf32>
    %53 = arith.divf %51, %52 : vector<8x1xf32>
    %c0_21 = arith.constant 0 : index
    %c0_22 = arith.constant 0 : index
    %c0_23 = arith.constant 0 : index
    %54 = vector.load %arg9[%c0_21, %c0_22, %c0_23] : memref<8x8x32xf32, #tpu.memory_space<vmem>>, vector<1x8x32xf32>
    %55 = vector.shape_cast %54 : vector<1x8x32xf32> to vector<8x32xf32>
    %56 = vector.shape_cast %43 : vector<8x32xf32> to vector<1x8x32xf32>
    tpu.vector_store %arg9[%c0_21, %c0_22, %c0_23], %56 {strides = array<i32>} : memref<8x8x32xf32, #tpu.memory_space<vmem>>, vector<1x8x32xf32>,
    %c0_24 = arith.constant 0 : index
    %c0_25 = arith.constant 0 : index
    %c0_26 = arith.constant 0 : index
    %57 = vector.load %arg10[%c0_24, %c0_25, %c0_26] : memref<8x8x32xf32, #tpu.memory_space<vmem>>, vector<1x8x32xf32>
    %58 = vector.shape_cast %57 : vector<1x8x32xf32> to vector<8x32xf32>
    %59 = vector.shape_cast %41 : vector<8x32xf32> to vector<1x8x32xf32>
    tpu.vector_store %arg10[%c0_24, %c0_25, %c0_26], %59 {strides = array<i32>} : memref<8x8x32xf32, #tpu.memory_space<vmem>>, vector<1x8x32xf32>,
    %c1 = arith.constant 1 : index
    %c0_27 = arith.constant 0 : index
    %c0_28 = arith.constant 0 : index
    %60 = vector.load %arg1[%c1, %c0_27, %c0_28] : memref<8x8x128xf32, #tpu.memory_space<vmem>>, vector<1x8x128xf32>
    %61 = vector.shape_cast %60 : vector<1x8x128xf32> to vector<8x128xf32>
    %c1_29 = arith.constant 1 : index
    %c0_30 = arith.constant 0 : index
    %c0_31 = arith.constant 0 : index
    %62 = vector.load %arg2[%c1_29, %c0_30, %c0_31] : memref<8x8x1xf32, #tpu.memory_space<vmem>>, vector<1x8x1xf32>
    %63 = vector.shape_cast %62 : vector<1x8x1xf32> to vector<8x1xf32>
    %64 = vector.broadcast %53 : vector<8x1xf32> to vector<8x128xf32>
    %65 = arith.mulf %64, %61 : vector<8x128xf32>
    %66 = arith.truncf %43 : vector<8x32xf32> to vector<8x32xbf16>
    %cst_32 = arith.constant dense<0.000000e+00> : vector<8x128xf32>
    %67 = tpu.matmul %66, %12, %cst_32 {dimension_numbers = #tpu.dot_dimension_numbers<[1], [0], [0], [1], [0, 0, 1, 1], [], []>} : vector<8x32xbf16>, vector<32x128xbf16>, vector<8x128xf32> -> vector<8x128xf32>
    %68 = arith.addf %65, %67 : vector<8x128xf32>
    %69 = vector.broadcast %13 : vector<1x128xf32> to vector<8x128xf32>
    %70 = arith.addf %68, %69 : vector<8x128xf32>
    %71 = math.tanh %70 : vector<8x128xf32>
    %72 = arith.negf %70 : vector<8x128xf32>
    %73 = math.exp %72 : vector<8x128xf32>
    %cst_33 = arith.constant 1.000000e+00 : f32
    %74 = vector.broadcast %cst_33 : f32 to vector<8x128xf32>
    %75 = arith.addf %74, %73 : vector<8x128xf32>
    %76 = arith.divf %74, %75 : vector<8x128xf32>
    %77 = vector.shape_cast %8 : vector<1x128xi1> to vector<1x128xi1>
    %78 = vector.broadcast %77 : vector<1x128xi1> to vector<8x128xi1>
    %79 = arith.select %78, %71, %76 : vector<8x128xi1>, vector<8x128xf32>
    %80 = vector.extract_strided_slice %79 {offsets = [0, 0], sizes = [8, 32], strides = [1, 1]} : vector<8x128xf32> to vector<8x32xf32>
    %81 = vector.extract_strided_slice %79 {offsets = [0, 32], sizes = [8, 32], strides = [1, 1]} : vector<8x128xf32> to vector<8x32xf32>
    %82 = vector.extract_strided_slice %79 {offsets = [0, 64], sizes = [8, 32], strides = [1, 1]} : vector<8x128xf32> to vector<8x32xf32>
    %83 = vector.extract_strided_slice %79 {offsets = [0, 96], sizes = [8, 32], strides = [1, 1]} : vector<8x128xf32> to vector<8x32xf32>
    %84 = arith.mulf %81, %41 : vector<8x32xf32>
    %85 = arith.mulf %80, %82 : vector<8x32xf32>
    %86 = arith.addf %84, %85 : vector<8x32xf32>
    %87 = math.tanh %86 : vector<8x32xf32>
    %88 = arith.mulf %83, %87 : vector<8x32xf32>
    %89 = vector.broadcast %14 : vector<1x32xf32> to vector<8x32xf32>
    %90 = arith.mulf %88, %89 : vector<8x32xf32>
    %cst_34 = arith.constant dense<0.000000e+00> : vector<8xf32>
    %91 = vector.multi_reduction <add>, %90, %cst_34 [1] : vector<8x32xf32> to vector<8xf32>
    %92 = vector.shape_cast %91 : vector<8xf32> to vector<8x1xf32>
    %93 = arith.addf %63, %92 : vector<8x1xf32>
    %94 = arith.negf %93 : vector<8x1xf32>
    %95 = math.exp %94 : vector<8x1xf32>
    %cst_35 = arith.constant 1.000000e+00 : f32
    %96 = vector.broadcast %cst_35 : f32 to vector<8x1xf32>
    %97 = arith.addf %96, %95 : vector<8x1xf32>
    %98 = arith.divf %96, %97 : vector<8x1xf32>
    %c1_36 = arith.constant 1 : index
    %c0_37 = arith.constant 0 : index
    %c0_38 = arith.constant 0 : index
    %99 = vector.load %arg9[%c1_36, %c0_37, %c0_38] : memref<8x8x32xf32, #tpu.memory_space<vmem>>, vector<1x8x32xf32>
    %100 = vector.shape_cast %99 : vector<1x8x32xf32> to vector<8x32xf32>
    %101 = vector.shape_cast %88 : vector<8x32xf32> to vector<1x8x32xf32>
    tpu.vector_store %arg9[%c1_36, %c0_37, %c0_38], %101 {strides = array<i32>} : memref<8x8x32xf32, #tpu.memory_space<vmem>>, vector<1x8x32xf32>,
    %c1_39 = arith.constant 1 : index
    %c0_40 = arith.constant 0 : index
    %c0_41 = arith.constant 0 : index
    %102 = vector.load %arg10[%c1_39, %c0_40, %c0_41] : memref<8x8x32xf32, #tpu.memory_space<vmem>>, vector<1x8x32xf32>
    %103 = vector.shape_cast %102 : vector<1x8x32xf32> to vector<8x32xf32>
    %104 = vector.shape_cast %86 : vector<8x32xf32> to vector<1x8x32xf32>
    tpu.vector_store %arg10[%c1_39, %c0_40, %c0_41], %104 {strides = array<i32>} : memref<8x8x32xf32, #tpu.memory_space<vmem>>, vector<1x8x32xf32>,
    %c2 = arith.constant 2 : index
    %c0_42 = arith.constant 0 : index
    %c0_43 = arith.constant 0 : index
    %105 = vector.load %arg1[%c2, %c0_42, %c0_43] : memref<8x8x128xf32, #tpu.memory_space<vmem>>, vector<1x8x128xf32>
    %106 = vector.shape_cast %105 : vector<1x8x128xf32> to vector<8x128xf32>
    %c2_44 = arith.constant 2 : index
    %c0_45 = arith.constant 0 : index
    %c0_46 = arith.constant 0 : index
    %107 = vector.load %arg2[%c2_44, %c0_45, %c0_46] : memref<8x8x1xf32, #tpu.memory_space<vmem>>, vector<1x8x1xf32>
    %108 = vector.shape_cast %107 : vector<1x8x1xf32> to vector<8x1xf32>
    %109 = vector.broadcast %98 : vector<8x1xf32> to vector<8x128xf32>
    %110 = arith.mulf %109, %106 : vector<8x128xf32>
    %111 = arith.truncf %88 : vector<8x32xf32> to vector<8x32xbf16>
    %cst_47 = arith.constant dense<0.000000e+00> : vector<8x128xf32>
    %112 = tpu.matmul %111, %12, %cst_47 {dimension_numbers = #tpu.dot_dimension_numbers<[1], [0], [0], [1], [0, 0, 1, 1], [], []>} : vector<8x32xbf16>, vector<32x128xbf16>, vector<8x128xf32> -> vector<8x128xf32>
    %113 = arith.addf %110, %112 : vector<8x128xf32>
    %114 = vector.broadcast %13 : vector<1x128xf32> to vector<8x128xf32>
    %115 = arith.addf %113, %114 : vector<8x128xf32>
    %116 = math.tanh %115 : vector<8x128xf32>
    %117 = arith.negf %115 : vector<8x128xf32>
    %118 = math.exp %117 : vector<8x128xf32>
    %cst_48 = arith.constant 1.000000e+00 : f32
    %119 = vector.broadcast %cst_48 : f32 to vector<8x128xf32>
    %120 = arith.addf %119, %118 : vector<8x128xf32>
    %121 = arith.divf %119, %120 : vector<8x128xf32>
    %122 = vector.shape_cast %8 : vector<1x128xi1> to vector<1x128xi1>
    %123 = vector.broadcast %122 : vector<1x128xi1> to vector<8x128xi1>
    %124 = arith.select %123, %116, %121 : vector<8x128xi1>, vector<8x128xf32>
    %125 = vector.extract_strided_slice %124 {offsets = [0, 0], sizes = [8, 32], strides = [1, 1]} : vector<8x128xf32> to vector<8x32xf32>
    %126 = vector.extract_strided_slice %124 {offsets = [0, 32], sizes = [8, 32], strides = [1, 1]} : vector<8x128xf32> to vector<8x32xf32>
    %127 = vector.extract_strided_slice %124 {offsets = [0, 64], sizes = [8, 32], strides = [1, 1]} : vector<8x128xf32> to vector<8x32xf32>
    %128 = vector.extract_strided_slice %124 {offsets = [0, 96], sizes = [8, 32], strides = [1, 1]} : vector<8x128xf32> to vector<8x32xf32>
    %129 = arith.mulf %126, %86 : vector<8x32xf32>
    %130 = arith.mulf %125, %127 : vector<8x32xf32>
    %131 = arith.addf %129, %130 : vector<8x32xf32>
    %132 = math.tanh %131 : vector<8x32xf32>
    %133 = arith.mulf %128, %132 : vector<8x32xf32>
    %134 = vector.broadcast %14 : vector<1x32xf32> to vector<8x32xf32>
    %135 = arith.mulf %133, %134 : vector<8x32xf32>
    %cst_49 = arith.constant dense<0.000000e+00> : vector<8xf32>
    %136 = vector.multi_reduction <add>, %135, %cst_49 [1] : vector<8x32xf32> to vector<8xf32>
    %137 = vector.shape_cast %136 : vector<8xf32> to vector<8x1xf32>
    %138 = arith.addf %108, %137 : vector<8x1xf32>
    %139 = arith.negf %138 : vector<8x1xf32>
    %140 = math.exp %139 : vector<8x1xf32>
    %cst_50 = arith.constant 1.000000e+00 : f32
    %141 = vector.broadcast %cst_50 : f32 to vector<8x1xf32>
    %142 = arith.addf %141, %140 : vector<8x1xf32>
    %143 = arith.divf %141, %142 : vector<8x1xf32>
    %c2_51 = arith.constant 2 : index
    %c0_52 = arith.constant 0 : index
    %c0_53 = arith.constant 0 : index
    %144 = vector.load %arg9[%c2_51, %c0_52, %c0_53] : memref<8x8x32xf32, #tpu.memory_space<vmem>>, vector<1x8x32xf32>
    %145 = vector.shape_cast %144 : vector<1x8x32xf32> to vector<8x32xf32>
    %146 = vector.shape_cast %133 : vector<8x32xf32> to vector<1x8x32xf32>
    tpu.vector_store %arg9[%c2_51, %c0_52, %c0_53], %146 {strides = array<i32>} : memref<8x8x32xf32, #tpu.memory_space<vmem>>, vector<1x8x32xf32>,
    %c2_54 = arith.constant 2 : index
    %c0_55 = arith.constant 0 : index
    %c0_56 = arith.constant 0 : index
    %147 = vector.load %arg10[%c2_54, %c0_55, %c0_56] : memref<8x8x32xf32, #tpu.memory_space<vmem>>, vector<1x8x32xf32>
    %148 = vector.shape_cast %147 : vector<1x8x32xf32> to vector<8x32xf32>
    %149 = vector.shape_cast %131 : vector<8x32xf32> to vector<1x8x32xf32>
    tpu.vector_store %arg10[%c2_54, %c0_55, %c0_56], %149 {strides = array<i32>} : memref<8x8x32xf32, #tpu.memory_space<vmem>>, vector<1x8x32xf32>,
    %c3 = arith.constant 3 : index
    %c0_57 = arith.constant 0 : index
    %c0_58 = arith.constant 0 : index
    %150 = vector.load %arg1[%c3, %c0_57, %c0_58] : memref<8x8x128xf32, #tpu.memory_space<vmem>>, vector<1x8x128xf32>
    %151 = vector.shape_cast %150 : vector<1x8x128xf32> to vector<8x128xf32>
    %c3_59 = arith.constant 3 : index
    %c0_60 = arith.constant 0 : index
    %c0_61 = arith.constant 0 : index
    %152 = vector.load %arg2[%c3_59, %c0_60, %c0_61] : memref<8x8x1xf32, #tpu.memory_space<vmem>>, vector<1x8x1xf32>
    %153 = vector.shape_cast %152 : vector<1x8x1xf32> to vector<8x1xf32>
    %154 = vector.broadcast %143 : vector<8x1xf32> to vector<8x128xf32>
    %155 = arith.mulf %154, %151 : vector<8x128xf32>
    %156 = arith.truncf %133 : vector<8x32xf32> to vector<8x32xbf16>
    %cst_62 = arith.constant dense<0.000000e+00> : vector<8x128xf32>
    %157 = tpu.matmul %156, %12, %cst_62 {dimension_numbers = #tpu.dot_dimension_numbers<[1], [0], [0], [1], [0, 0, 1, 1], [], []>} : vector<8x32xbf16>, vector<32x128xbf16>, vector<8x128xf32> -> vector<8x128xf32>
    %158 = arith.addf %155, %157 : vector<8x128xf32>
    %159 = vector.broadcast %13 : vector<1x128xf32> to vector<8x128xf32>
    %160 = arith.addf %158, %159 : vector<8x128xf32>
    %161 = math.tanh %160 : vector<8x128xf32>
    %162 = arith.negf %160 : vector<8x128xf32>
    %163 = math.exp %162 : vector<8x128xf32>
    %cst_63 = arith.constant 1.000000e+00 : f32
    %164 = vector.broadcast %cst_63 : f32 to vector<8x128xf32>
    %165 = arith.addf %164, %163 : vector<8x128xf32>
    %166 = arith.divf %164, %165 : vector<8x128xf32>
    %167 = vector.shape_cast %8 : vector<1x128xi1> to vector<1x128xi1>
    %168 = vector.broadcast %167 : vector<1x128xi1> to vector<8x128xi1>
    %169 = arith.select %168, %161, %166 : vector<8x128xi1>, vector<8x128xf32>
    %170 = vector.extract_strided_slice %169 {offsets = [0, 0], sizes = [8, 32], strides = [1, 1]} : vector<8x128xf32> to vector<8x32xf32>
    %171 = vector.extract_strided_slice %169 {offsets = [0, 32], sizes = [8, 32], strides = [1, 1]} : vector<8x128xf32> to vector<8x32xf32>
    %172 = vector.extract_strided_slice %169 {offsets = [0, 64], sizes = [8, 32], strides = [1, 1]} : vector<8x128xf32> to vector<8x32xf32>
    %173 = vector.extract_strided_slice %169 {offsets = [0, 96], sizes = [8, 32], strides = [1, 1]} : vector<8x128xf32> to vector<8x32xf32>
    %174 = arith.mulf %171, %131 : vector<8x32xf32>
    %175 = arith.mulf %170, %172 : vector<8x32xf32>
    %176 = arith.addf %174, %175 : vector<8x32xf32>
    %177 = math.tanh %176 : vector<8x32xf32>
    %178 = arith.mulf %173, %177 : vector<8x32xf32>
    %179 = vector.broadcast %14 : vector<1x32xf32> to vector<8x32xf32>
    %180 = arith.mulf %178, %179 : vector<8x32xf32>
    %cst_64 = arith.constant dense<0.000000e+00> : vector<8xf32>
    %181 = vector.multi_reduction <add>, %180, %cst_64 [1] : vector<8x32xf32> to vector<8xf32>
    %182 = vector.shape_cast %181 : vector<8xf32> to vector<8x1xf32>
    %183 = arith.addf %153, %182 : vector<8x1xf32>
    %184 = arith.negf %183 : vector<8x1xf32>
    %185 = math.exp %184 : vector<8x1xf32>
    %cst_65 = arith.constant 1.000000e+00 : f32
    %186 = vector.broadcast %cst_65 : f32 to vector<8x1xf32>
    %187 = arith.addf %186, %185 : vector<8x1xf32>
    %188 = arith.divf %186, %187 : vector<8x1xf32>
    %c3_66 = arith.constant 3 : index
    %c0_67 = arith.constant 0 : index
    %c0_68 = arith.constant 0 : index
    %189 = vector.load %arg9[%c3_66, %c0_67, %c0_68] : memref<8x8x32xf32, #tpu.memory_space<vmem>>, vector<1x8x32xf32>
    %190 = vector.shape_cast %189 : vector<1x8x32xf32> to vector<8x32xf32>
    %191 = vector.shape_cast %178 : vector<8x32xf32> to vector<1x8x32xf32>
    tpu.vector_store %arg9[%c3_66, %c0_67, %c0_68], %191 {strides = array<i32>} : memref<8x8x32xf32, #tpu.memory_space<vmem>>, vector<1x8x32xf32>,
    %c3_69 = arith.constant 3 : index
    %c0_70 = arith.constant 0 : index
    %c0_71 = arith.constant 0 : index
    %192 = vector.load %arg10[%c3_69, %c0_70, %c0_71] : memref<8x8x32xf32, #tpu.memory_space<vmem>>, vector<1x8x32xf32>
    %193 = vector.shape_cast %192 : vector<1x8x32xf32> to vector<8x32xf32>
    %194 = vector.shape_cast %176 : vector<8x32xf32> to vector<1x8x32xf32>
    tpu.vector_store %arg10[%c3_69, %c0_70, %c0_71], %194 {strides = array<i32>} : memref<8x8x32xf32, #tpu.memory_space<vmem>>, vector<1x8x32xf32>,
    %c4 = arith.constant 4 : index
    %c0_72 = arith.constant 0 : index
    %c0_73 = arith.constant 0 : index
    %195 = vector.load %arg1[%c4, %c0_72, %c0_73] : memref<8x8x128xf32, #tpu.memory_space<vmem>>, vector<1x8x128xf32>
    %196 = vector.shape_cast %195 : vector<1x8x128xf32> to vector<8x128xf32>
    %c4_74 = arith.constant 4 : index
    %c0_75 = arith.constant 0 : index
    %c0_76 = arith.constant 0 : index
    %197 = vector.load %arg2[%c4_74, %c0_75, %c0_76] : memref<8x8x1xf32, #tpu.memory_space<vmem>>, vector<1x8x1xf32>
    %198 = vector.shape_cast %197 : vector<1x8x1xf32> to vector<8x1xf32>
    %199 = vector.broadcast %188 : vector<8x1xf32> to vector<8x128xf32>
    %200 = arith.mulf %199, %196 : vector<8x128xf32>
    %201 = arith.truncf %178 : vector<8x32xf32> to vector<8x32xbf16>
    %cst_77 = arith.constant dense<0.000000e+00> : vector<8x128xf32>
    %202 = tpu.matmul %201, %12, %cst_77 {dimension_numbers = #tpu.dot_dimension_numbers<[1], [0], [0], [1], [0, 0, 1, 1], [], []>} : vector<8x32xbf16>, vector<32x128xbf16>, vector<8x128xf32> -> vector<8x128xf32>
    %203 = arith.addf %200, %202 : vector<8x128xf32>
    %204 = vector.broadcast %13 : vector<1x128xf32> to vector<8x128xf32>
    %205 = arith.addf %203, %204 : vector<8x128xf32>
    %206 = math.tanh %205 : vector<8x128xf32>
    %207 = arith.negf %205 : vector<8x128xf32>
    %208 = math.exp %207 : vector<8x128xf32>
    %cst_78 = arith.constant 1.000000e+00 : f32
    %209 = vector.broadcast %cst_78 : f32 to vector<8x128xf32>
    %210 = arith.addf %209, %208 : vector<8x128xf32>
    %211 = arith.divf %209, %210 : vector<8x128xf32>
    %212 = vector.shape_cast %8 : vector<1x128xi1> to vector<1x128xi1>
    %213 = vector.broadcast %212 : vector<1x128xi1> to vector<8x128xi1>
    %214 = arith.select %213, %206, %211 : vector<8x128xi1>, vector<8x128xf32>
    %215 = vector.extract_strided_slice %214 {offsets = [0, 0], sizes = [8, 32], strides = [1, 1]} : vector<8x128xf32> to vector<8x32xf32>
    %216 = vector.extract_strided_slice %214 {offsets = [0, 32], sizes = [8, 32], strides = [1, 1]} : vector<8x128xf32> to vector<8x32xf32>
    %217 = vector.extract_strided_slice %214 {offsets = [0, 64], sizes = [8, 32], strides = [1, 1]} : vector<8x128xf32> to vector<8x32xf32>
    %218 = vector.extract_strided_slice %214 {offsets = [0, 96], sizes = [8, 32], strides = [1, 1]} : vector<8x128xf32> to vector<8x32xf32>
    %219 = arith.mulf %216, %176 : vector<8x32xf32>
    %220 = arith.mulf %215, %217 : vector<8x32xf32>
    %221 = arith.addf %219, %220 : vector<8x32xf32>
    %222 = math.tanh %221 : vector<8x32xf32>
    %223 = arith.mulf %218, %222 : vector<8x32xf32>
    %224 = vector.broadcast %14 : vector<1x32xf32> to vector<8x32xf32>
    %225 = arith.mulf %223, %224 : vector<8x32xf32>
    %cst_79 = arith.constant dense<0.000000e+00> : vector<8xf32>
    %226 = vector.multi_reduction <add>, %225, %cst_79 [1] : vector<8x32xf32> to vector<8xf32>
    %227 = vector.shape_cast %226 : vector<8xf32> to vector<8x1xf32>
    %228 = arith.addf %198, %227 : vector<8x1xf32>
    %229 = arith.negf %228 : vector<8x1xf32>
    %230 = math.exp %229 : vector<8x1xf32>
    %cst_80 = arith.constant 1.000000e+00 : f32
    %231 = vector.broadcast %cst_80 : f32 to vector<8x1xf32>
    %232 = arith.addf %231, %230 : vector<8x1xf32>
    %233 = arith.divf %231, %232 : vector<8x1xf32>
    %c4_81 = arith.constant 4 : index
    %c0_82 = arith.constant 0 : index
    %c0_83 = arith.constant 0 : index
    %234 = vector.load %arg9[%c4_81, %c0_82, %c0_83] : memref<8x8x32xf32, #tpu.memory_space<vmem>>, vector<1x8x32xf32>
    %235 = vector.shape_cast %234 : vector<1x8x32xf32> to vector<8x32xf32>
    %236 = vector.shape_cast %223 : vector<8x32xf32> to vector<1x8x32xf32>
    tpu.vector_store %arg9[%c4_81, %c0_82, %c0_83], %236 {strides = array<i32>} : memref<8x8x32xf32, #tpu.memory_space<vmem>>, vector<1x8x32xf32>,
    %c4_84 = arith.constant 4 : index
    %c0_85 = arith.constant 0 : index
    %c0_86 = arith.constant 0 : index
    %237 = vector.load %arg10[%c4_84, %c0_85, %c0_86] : memref<8x8x32xf32, #tpu.memory_space<vmem>>, vector<1x8x32xf32>
    %238 = vector.shape_cast %237 : vector<1x8x32xf32> to vector<8x32xf32>
    %239 = vector.shape_cast %221 : vector<8x32xf32> to vector<1x8x32xf32>
    tpu.vector_store %arg10[%c4_84, %c0_85, %c0_86], %239 {strides = array<i32>} : memref<8x8x32xf32, #tpu.memory_space<vmem>>, vector<1x8x32xf32>,
    %c5 = arith.constant 5 : index
    %c0_87 = arith.constant 0 : index
    %c0_88 = arith.constant 0 : index
    %240 = vector.load %arg1[%c5, %c0_87, %c0_88] : memref<8x8x128xf32, #tpu.memory_space<vmem>>, vector<1x8x128xf32>
    %241 = vector.shape_cast %240 : vector<1x8x128xf32> to vector<8x128xf32>
    %c5_89 = arith.constant 5 : index
    %c0_90 = arith.constant 0 : index
    %c0_91 = arith.constant 0 : index
    %242 = vector.load %arg2[%c5_89, %c0_90, %c0_91] : memref<8x8x1xf32, #tpu.memory_space<vmem>>, vector<1x8x1xf32>
    %243 = vector.shape_cast %242 : vector<1x8x1xf32> to vector<8x1xf32>
    %244 = vector.broadcast %233 : vector<8x1xf32> to vector<8x128xf32>
    %245 = arith.mulf %244, %241 : vector<8x128xf32>
    %246 = arith.truncf %223 : vector<8x32xf32> to vector<8x32xbf16>
    %cst_92 = arith.constant dense<0.000000e+00> : vector<8x128xf32>
    %247 = tpu.matmul %246, %12, %cst_92 {dimension_numbers = #tpu.dot_dimension_numbers<[1], [0], [0], [1], [0, 0, 1, 1], [], []>} : vector<8x32xbf16>, vector<32x128xbf16>, vector<8x128xf32> -> vector<8x128xf32>
    %248 = arith.addf %245, %247 : vector<8x128xf32>
    %249 = vector.broadcast %13 : vector<1x128xf32> to vector<8x128xf32>
    %250 = arith.addf %248, %249 : vector<8x128xf32>
    %251 = math.tanh %250 : vector<8x128xf32>
    %252 = arith.negf %250 : vector<8x128xf32>
    %253 = math.exp %252 : vector<8x128xf32>
    %cst_93 = arith.constant 1.000000e+00 : f32
    %254 = vector.broadcast %cst_93 : f32 to vector<8x128xf32>
    %255 = arith.addf %254, %253 : vector<8x128xf32>
    %256 = arith.divf %254, %255 : vector<8x128xf32>
    %257 = vector.shape_cast %8 : vector<1x128xi1> to vector<1x128xi1>
    %258 = vector.broadcast %257 : vector<1x128xi1> to vector<8x128xi1>
    %259 = arith.select %258, %251, %256 : vector<8x128xi1>, vector<8x128xf32>
    %260 = vector.extract_strided_slice %259 {offsets = [0, 0], sizes = [8, 32], strides = [1, 1]} : vector<8x128xf32> to vector<8x32xf32>
    %261 = vector.extract_strided_slice %259 {offsets = [0, 32], sizes = [8, 32], strides = [1, 1]} : vector<8x128xf32> to vector<8x32xf32>
    %262 = vector.extract_strided_slice %259 {offsets = [0, 64], sizes = [8, 32], strides = [1, 1]} : vector<8x128xf32> to vector<8x32xf32>
    %263 = vector.extract_strided_slice %259 {offsets = [0, 96], sizes = [8, 32], strides = [1, 1]} : vector<8x128xf32> to vector<8x32xf32>
    %264 = arith.mulf %261, %221 : vector<8x32xf32>
    %265 = arith.mulf %260, %262 : vector<8x32xf32>
    %266 = arith.addf %264, %265 : vector<8x32xf32>
    %267 = math.tanh %266 : vector<8x32xf32>
    %268 = arith.mulf %263, %267 : vector<8x32xf32>
    %269 = vector.broadcast %14 : vector<1x32xf32> to vector<8x32xf32>
    %270 = arith.mulf %268, %269 : vector<8x32xf32>
    %cst_94 = arith.constant dense<0.000000e+00> : vector<8xf32>
    %271 = vector.multi_reduction <add>, %270, %cst_94 [1] : vector<8x32xf32> to vector<8xf32>
    %272 = vector.shape_cast %271 : vector<8xf32> to vector<8x1xf32>
    %273 = arith.addf %243, %272 : vector<8x1xf32>
    %274 = arith.negf %273 : vector<8x1xf32>
    %275 = math.exp %274 : vector<8x1xf32>
    %cst_95 = arith.constant 1.000000e+00 : f32
    %276 = vector.broadcast %cst_95 : f32 to vector<8x1xf32>
    %277 = arith.addf %276, %275 : vector<8x1xf32>
    %278 = arith.divf %276, %277 : vector<8x1xf32>
    %c5_96 = arith.constant 5 : index
    %c0_97 = arith.constant 0 : index
    %c0_98 = arith.constant 0 : index
    %279 = vector.load %arg9[%c5_96, %c0_97, %c0_98] : memref<8x8x32xf32, #tpu.memory_space<vmem>>, vector<1x8x32xf32>
    %280 = vector.shape_cast %279 : vector<1x8x32xf32> to vector<8x32xf32>
    %281 = vector.shape_cast %268 : vector<8x32xf32> to vector<1x8x32xf32>
    tpu.vector_store %arg9[%c5_96, %c0_97, %c0_98], %281 {strides = array<i32>} : memref<8x8x32xf32, #tpu.memory_space<vmem>>, vector<1x8x32xf32>,
    %c5_99 = arith.constant 5 : index
    %c0_100 = arith.constant 0 : index
    %c0_101 = arith.constant 0 : index
    %282 = vector.load %arg10[%c5_99, %c0_100, %c0_101] : memref<8x8x32xf32, #tpu.memory_space<vmem>>, vector<1x8x32xf32>
    %283 = vector.shape_cast %282 : vector<1x8x32xf32> to vector<8x32xf32>
    %284 = vector.shape_cast %266 : vector<8x32xf32> to vector<1x8x32xf32>
    tpu.vector_store %arg10[%c5_99, %c0_100, %c0_101], %284 {strides = array<i32>} : memref<8x8x32xf32, #tpu.memory_space<vmem>>, vector<1x8x32xf32>,
    %c6 = arith.constant 6 : index
    %c0_102 = arith.constant 0 : index
    %c0_103 = arith.constant 0 : index
    %285 = vector.load %arg1[%c6, %c0_102, %c0_103] : memref<8x8x128xf32, #tpu.memory_space<vmem>>, vector<1x8x128xf32>
    %286 = vector.shape_cast %285 : vector<1x8x128xf32> to vector<8x128xf32>
    %c6_104 = arith.constant 6 : index
    %c0_105 = arith.constant 0 : index
    %c0_106 = arith.constant 0 : index
    %287 = vector.load %arg2[%c6_104, %c0_105, %c0_106] : memref<8x8x1xf32, #tpu.memory_space<vmem>>, vector<1x8x1xf32>
    %288 = vector.shape_cast %287 : vector<1x8x1xf32> to vector<8x1xf32>
    %289 = vector.broadcast %278 : vector<8x1xf32> to vector<8x128xf32>
    %290 = arith.mulf %289, %286 : vector<8x128xf32>
    %291 = arith.truncf %268 : vector<8x32xf32> to vector<8x32xbf16>
    %cst_107 = arith.constant dense<0.000000e+00> : vector<8x128xf32>
    %292 = tpu.matmul %291, %12, %cst_107 {dimension_numbers = #tpu.dot_dimension_numbers<[1], [0], [0], [1], [0, 0, 1, 1], [], []>} : vector<8x32xbf16>, vector<32x128xbf16>, vector<8x128xf32> -> vector<8x128xf32>
    %293 = arith.addf %290, %292 : vector<8x128xf32>
    %294 = vector.broadcast %13 : vector<1x128xf32> to vector<8x128xf32>
    %295 = arith.addf %293, %294 : vector<8x128xf32>
    %296 = math.tanh %295 : vector<8x128xf32>
    %297 = arith.negf %295 : vector<8x128xf32>
    %298 = math.exp %297 : vector<8x128xf32>
    %cst_108 = arith.constant 1.000000e+00 : f32
    %299 = vector.broadcast %cst_108 : f32 to vector<8x128xf32>
    %300 = arith.addf %299, %298 : vector<8x128xf32>
    %301 = arith.divf %299, %300 : vector<8x128xf32>
    %302 = vector.shape_cast %8 : vector<1x128xi1> to vector<1x128xi1>
    %303 = vector.broadcast %302 : vector<1x128xi1> to vector<8x128xi1>
    %304 = arith.select %303, %296, %301 : vector<8x128xi1>, vector<8x128xf32>
    %305 = vector.extract_strided_slice %304 {offsets = [0, 0], sizes = [8, 32], strides = [1, 1]} : vector<8x128xf32> to vector<8x32xf32>
    %306 = vector.extract_strided_slice %304 {offsets = [0, 32], sizes = [8, 32], strides = [1, 1]} : vector<8x128xf32> to vector<8x32xf32>
    %307 = vector.extract_strided_slice %304 {offsets = [0, 64], sizes = [8, 32], strides = [1, 1]} : vector<8x128xf32> to vector<8x32xf32>
    %308 = vector.extract_strided_slice %304 {offsets = [0, 96], sizes = [8, 32], strides = [1, 1]} : vector<8x128xf32> to vector<8x32xf32>
    %309 = arith.mulf %306, %266 : vector<8x32xf32>
    %310 = arith.mulf %305, %307 : vector<8x32xf32>
    %311 = arith.addf %309, %310 : vector<8x32xf32>
    %312 = math.tanh %311 : vector<8x32xf32>
    %313 = arith.mulf %308, %312 : vector<8x32xf32>
    %314 = vector.broadcast %14 : vector<1x32xf32> to vector<8x32xf32>
    %315 = arith.mulf %313, %314 : vector<8x32xf32>
    %cst_109 = arith.constant dense<0.000000e+00> : vector<8xf32>
    %316 = vector.multi_reduction <add>, %315, %cst_109 [1] : vector<8x32xf32> to vector<8xf32>
    %317 = vector.shape_cast %316 : vector<8xf32> to vector<8x1xf32>
    %318 = arith.addf %288, %317 : vector<8x1xf32>
    %319 = arith.negf %318 : vector<8x1xf32>
    %320 = math.exp %319 : vector<8x1xf32>
    %cst_110 = arith.constant 1.000000e+00 : f32
    %321 = vector.broadcast %cst_110 : f32 to vector<8x1xf32>
    %322 = arith.addf %321, %320 : vector<8x1xf32>
    %323 = arith.divf %321, %322 : vector<8x1xf32>
    %c6_111 = arith.constant 6 : index
    %c0_112 = arith.constant 0 : index
    %c0_113 = arith.constant 0 : index
    %324 = vector.load %arg9[%c6_111, %c0_112, %c0_113] : memref<8x8x32xf32, #tpu.memory_space<vmem>>, vector<1x8x32xf32>
    %325 = vector.shape_cast %324 : vector<1x8x32xf32> to vector<8x32xf32>
    %326 = vector.shape_cast %313 : vector<8x32xf32> to vector<1x8x32xf32>
    tpu.vector_store %arg9[%c6_111, %c0_112, %c0_113], %326 {strides = array<i32>} : memref<8x8x32xf32, #tpu.memory_space<vmem>>, vector<1x8x32xf32>,
    %c6_114 = arith.constant 6 : index
    %c0_115 = arith.constant 0 : index
    %c0_116 = arith.constant 0 : index
    %327 = vector.load %arg10[%c6_114, %c0_115, %c0_116] : memref<8x8x32xf32, #tpu.memory_space<vmem>>, vector<1x8x32xf32>
    %328 = vector.shape_cast %327 : vector<1x8x32xf32> to vector<8x32xf32>
    %329 = vector.shape_cast %311 : vector<8x32xf32> to vector<1x8x32xf32>
    tpu.vector_store %arg10[%c6_114, %c0_115, %c0_116], %329 {strides = array<i32>} : memref<8x8x32xf32, #tpu.memory_space<vmem>>, vector<1x8x32xf32>,
    %c7 = arith.constant 7 : index
    %c0_117 = arith.constant 0 : index
    %c0_118 = arith.constant 0 : index
    %330 = vector.load %arg1[%c7, %c0_117, %c0_118] : memref<8x8x128xf32, #tpu.memory_space<vmem>>, vector<1x8x128xf32>
    %331 = vector.shape_cast %330 : vector<1x8x128xf32> to vector<8x128xf32>
    %c7_119 = arith.constant 7 : index
    %c0_120 = arith.constant 0 : index
    %c0_121 = arith.constant 0 : index
    %332 = vector.load %arg2[%c7_119, %c0_120, %c0_121] : memref<8x8x1xf32, #tpu.memory_space<vmem>>, vector<1x8x1xf32>
    %333 = vector.shape_cast %332 : vector<1x8x1xf32> to vector<8x1xf32>
    %334 = vector.broadcast %323 : vector<8x1xf32> to vector<8x128xf32>
    %335 = arith.mulf %334, %331 : vector<8x128xf32>
    %336 = arith.truncf %313 : vector<8x32xf32> to vector<8x32xbf16>
    %cst_122 = arith.constant dense<0.000000e+00> : vector<8x128xf32>
    %337 = tpu.matmul %336, %12, %cst_122 {dimension_numbers = #tpu.dot_dimension_numbers<[1], [0], [0], [1], [0, 0, 1, 1], [], []>} : vector<8x32xbf16>, vector<32x128xbf16>, vector<8x128xf32> -> vector<8x128xf32>
    %338 = arith.addf %335, %337 : vector<8x128xf32>
    %339 = vector.broadcast %13 : vector<1x128xf32> to vector<8x128xf32>
    %340 = arith.addf %338, %339 : vector<8x128xf32>
    %341 = math.tanh %340 : vector<8x128xf32>
    %342 = arith.negf %340 : vector<8x128xf32>
    %343 = math.exp %342 : vector<8x128xf32>
    %cst_123 = arith.constant 1.000000e+00 : f32
    %344 = vector.broadcast %cst_123 : f32 to vector<8x128xf32>
    %345 = arith.addf %344, %343 : vector<8x128xf32>
    %346 = arith.divf %344, %345 : vector<8x128xf32>
    %347 = vector.shape_cast %8 : vector<1x128xi1> to vector<1x128xi1>
    %348 = vector.broadcast %347 : vector<1x128xi1> to vector<8x128xi1>
    %349 = arith.select %348, %341, %346 : vector<8x128xi1>, vector<8x128xf32>
    %350 = vector.extract_strided_slice %349 {offsets = [0, 0], sizes = [8, 32], strides = [1, 1]} : vector<8x128xf32> to vector<8x32xf32>
    %351 = vector.extract_strided_slice %349 {offsets = [0, 32], sizes = [8, 32], strides = [1, 1]} : vector<8x128xf32> to vector<8x32xf32>
    %352 = vector.extract_strided_slice %349 {offsets = [0, 64], sizes = [8, 32], strides = [1, 1]} : vector<8x128xf32> to vector<8x32xf32>
    %353 = vector.extract_strided_slice %349 {offsets = [0, 96], sizes = [8, 32], strides = [1, 1]} : vector<8x128xf32> to vector<8x32xf32>
    %354 = arith.mulf %351, %311 : vector<8x32xf32>
    %355 = arith.mulf %350, %352 : vector<8x32xf32>
    %356 = arith.addf %354, %355 : vector<8x32xf32>
    %357 = math.tanh %356 : vector<8x32xf32>
    %358 = arith.mulf %353, %357 : vector<8x32xf32>
    %359 = vector.broadcast %14 : vector<1x32xf32> to vector<8x32xf32>
    %360 = arith.mulf %358, %359 : vector<8x32xf32>
    %cst_124 = arith.constant dense<0.000000e+00> : vector<8xf32>
    %361 = vector.multi_reduction <add>, %360, %cst_124 [1] : vector<8x32xf32> to vector<8xf32>
    %362 = vector.shape_cast %361 : vector<8xf32> to vector<8x1xf32>
    %363 = arith.addf %333, %362 : vector<8x1xf32>
    %364 = arith.negf %363 : vector<8x1xf32>
    %365 = math.exp %364 : vector<8x1xf32>
    %cst_125 = arith.constant 1.000000e+00 : f32
    %366 = vector.broadcast %cst_125 : f32 to vector<8x1xf32>
    %367 = arith.addf %366, %365 : vector<8x1xf32>
    %368 = arith.divf %366, %367 : vector<8x1xf32>
    %c7_126 = arith.constant 7 : index
    %c0_127 = arith.constant 0 : index
    %c0_128 = arith.constant 0 : index
    %369 = vector.load %arg9[%c7_126, %c0_127, %c0_128] : memref<8x8x32xf32, #tpu.memory_space<vmem>>, vector<1x8x32xf32>
    %370 = vector.shape_cast %369 : vector<1x8x32xf32> to vector<8x32xf32>
    %371 = vector.shape_cast %358 : vector<8x32xf32> to vector<1x8x32xf32>
    tpu.vector_store %arg9[%c7_126, %c0_127, %c0_128], %371 {strides = array<i32>} : memref<8x8x32xf32, #tpu.memory_space<vmem>>, vector<1x8x32xf32>,
    %c7_129 = arith.constant 7 : index
    %c0_130 = arith.constant 0 : index
    %c0_131 = arith.constant 0 : index
    %372 = vector.load %arg10[%c7_129, %c0_130, %c0_131] : memref<8x8x32xf32, #tpu.memory_space<vmem>>, vector<1x8x32xf32>
    %373 = vector.shape_cast %372 : vector<1x8x32xf32> to vector<8x32xf32>
    %374 = vector.shape_cast %356 : vector<8x32xf32> to vector<1x8x32xf32>
    tpu.vector_store %arg10[%c7_129, %c0_130, %c0_131], %374 {strides = array<i32>} : memref<8x8x32xf32, #tpu.memory_space<vmem>>, vector<1x8x32xf32>,
    %375 = tpu.concatenate %53, %98, %143, %188, %233, %278, %323, %368 in 1 : vector<8x1xf32>, vector<8x1xf32>, vector<8x1xf32>, vector<8x1xf32>, vector<8x1xf32>, vector<8x1xf32>, vector<8x1xf32>, vector<8x1xf32> -> vector<8x8xf32>
    %c0_132 = arith.constant 0 : index
    %c0_133 = arith.constant 0 : index
    %c0_134 = arith.constant 0 : index
    %376 = vector.load %arg11[%c0_132, %c0_133, %c0_134] : memref<1x8x8xf32, #tpu.memory_space<vmem>>, vector<1x8x8xf32>
    %377 = vector.shape_cast %376 : vector<1x8x8xf32> to vector<8x8xf32>
    %378 = vector.shape_cast %375 : vector<8x8xf32> to vector<1x8x8xf32>
    tpu.vector_store %arg11[%c0_132, %c0_133, %c0_134], %378 {strides = array<i32>} : memref<1x8x8xf32, #tpu.memory_space<vmem>>, vector<1x8x8xf32>,
    %c0_135 = arith.constant 0 : index
    %c0_136 = arith.constant 0 : index
    %379 = vector.load %arg12[%c0_135, %c0_136] : memref<8x32xf32, #tpu.memory_space<vmem>>, vector<8x32xf32>
    tpu.vector_store %arg12[%c0_135, %c0_136], %358 {strides = array<i32>} : memref<8x32xf32, #tpu.memory_space<vmem>>, vector<8x32xf32>,
    %c0_137 = arith.constant 0 : index
    %c0_138 = arith.constant 0 : index
    %380 = vector.load %arg13[%c0_137, %c0_138] : memref<8x32xf32, #tpu.memory_space<vmem>>, vector<8x32xf32>
    tpu.vector_store %arg13[%c0_137, %c0_138], %356 {strides = array<i32>} : memref<8x32xf32, #tpu.memory_space<vmem>>, vector<8x32xf32>,
    %c0_139 = arith.constant 0 : index
    %c0_140 = arith.constant 0 : index
    %381 = vector.load %arg14[%c0_139, %c0_140] : memref<8x1xf32, #tpu.memory_space<vmem>>, vector<8x1xf32>
    tpu.vector_store %arg14[%c0_139, %c0_140], %368 {strides = array<i32>} : memref<8x1xf32, #tpu.memory_space<vmem>>, vector<8x1xf32>,
    return
  }
  func.func @transform_0(%arg0: i32) -> (i32, i32, i32) {
    %c0_i32 = arith.constant 0 : i32
    %c0_i32_0 = arith.constant 0 : i32
    %c0_i32_1 = arith.constant 0 : i32
    return %arg0, %c0_i32, %c0_i32_0 : i32, i32, i32
  }
  func.func @transform_1(%arg0: i32) -> (i32, i32, i32) {
    %c0_i32 = arith.constant 0 : i32
    %c0_i32_0 = arith.constant 0 : i32
    %c0_i32_1 = arith.constant 0 : i32
    return %arg0, %c0_i32, %c0_i32_0 : i32, i32, i32
  }
  func.func @transform_2(%arg0: i32) -> (i32, i32) {
    %c0_i32 = arith.constant 0 : i32
    %c0_i32_0 = arith.constant 0 : i32
    %c0_i32_1 = arith.constant 0 : i32
    return %c0_i32, %c0_i32_0 : i32, i32
  }
  func.func @transform_3(%arg0: i32) -> (i32, i32) {
    %c0_i32 = arith.constant 0 : i32
    %c0_i32_0 = arith.constant 0 : i32
    %c0_i32_1 = arith.constant 0 : i32
    return %c0_i32, %c0_i32_0 : i32, i32
  }
  func.func @transform_4(%arg0: i32) -> (i32, i32) {
    %c0_i32 = arith.constant 0 : i32
    %c0_i32_0 = arith.constant 0 : i32
    %c0_i32_1 = arith.constant 0 : i32
    return %c0_i32, %c0_i32_0 : i32, i32
  }
  func.func @transform_5(%arg0: i32) -> (i32, i32) {
    %c0_i32 = arith.constant 0 : i32
    %c0_i32_0 = arith.constant 0 : i32
    %c0_i32_1 = arith.constant 0 : i32
    return %c0_i32, %c0_i32_0 : i32, i32
  }
  func.func @transform_6(%arg0: i32) -> (i32, i32) {
    %c0_i32 = arith.constant 0 : i32
    %c0_i32_0 = arith.constant 0 : i32
    %c0_i32_1 = arith.constant 0 : i32
    return %c0_i32, %c0_i32_0 : i32, i32
  }
  func.func @transform_7(%arg0: i32) -> (i32, i32) {
    %c0_i32 = arith.constant 0 : i32
    %c0_i32_0 = arith.constant 0 : i32
    %c0_i32_1 = arith.constant 0 : i32
    return %c0_i32, %c0_i32_0 : i32, i32
  }
  func.func @transform_8(%arg0: i32) -> (i32, i32, i32) {
    %c0_i32 = arith.constant 0 : i32
    %c0_i32_0 = arith.constant 0 : i32
    %c0_i32_1 = arith.constant 0 : i32
    return %arg0, %c0_i32, %c0_i32_0 : i32, i32, i32
  }
  func.func @transform_9(%arg0: i32) -> (i32, i32, i32) {
    %c0_i32 = arith.constant 0 : i32
    %c0_i32_0 = arith.constant 0 : i32
    %c0_i32_1 = arith.constant 0 : i32
    return %arg0, %c0_i32, %c0_i32_0 : i32, i32, i32
  }
  func.func @transform_10(%arg0: i32) -> (i32, i32, i32) {
    %c0_i32 = arith.constant 0 : i32
    %c0_i32_0 = arith.constant 0 : i32
    %c0_i32_1 = arith.constant 0 : i32
    return %arg0, %c0_i32, %c0_i32_0 : i32, i32, i32
  }
}

</mosaic_0001>

<llo_original>
// kernel: tpu_custom_call.1
$region0: #{tpu_custom_call.1}
  #allocation0 [shape = 'u32[]', space=smem, size = 0x4, offset = 0x4, fixed_abs, tag = 'smem constant byte address 0x4 - core index']
  #allocation1 [shape = 'u32[144,128]{1,0:T(1,128)}', space=vmem, size = 0x12000, scoped, tag = 'internal scratch']
  #allocation2 [shape = 'f32[8,32]{1,0:T(8,128)}', space=vmem, size = 0x1000, scoped, tag = 'scratch operand']
  #allocation3 [shape = 'f32[8,32]{1,0:T(8,128)}', space=vmem, size = 0x1000, scoped, tag = 'scratch operand']
  #allocation4 [shape = 'f32[8,1]{1,0:T(8,128)}', space=vmem, size = 0x1000, scoped, tag = 'scratch operand']
  %s0 = inlined_call_operand.vmem [shape: f32[8,8,128], index: 0, kind: input, shape index: {}]
  %s1 = inlined_call_operand.vmem [shape: f32[8,8,1], index: 1, kind: input, shape index: {}]
  %s2 = inlined_call_operand.vmem [shape: f32[8,32], index: 2, kind: input, shape index: {}]
  %s3 = inlined_call_operand.hbm [shape: f32[8,32], index: 3, kind: input, shape index: {}]
  %s4 = inlined_call_operand.vmem [shape: f32[8,1], index: 4, kind: input, shape index: {}]
  %s5 = inlined_call_operand.vmem [shape: bf16[32,128], index: 5, kind: input, shape index: {}]
  %s6 = inlined_call_operand.vmem [shape: f32[1,128], index: 6, kind: input, shape index: {}]
  %s7 = inlined_call_operand.vmem [shape: f32[1,32], index: 7, kind: input, shape index: {}]
  %s8 = inlined_call_operand.hbm [shape: f32[8,8,32], index: 8, kind: output, shape index: {0}]
  %s9 = inlined_call_operand.hbm [shape: f32[8,8,32], index: 9, kind: output, shape index: {1}]
  %s10 = inlined_call_operand.hbm [shape: f32[1,8,8], index: 10, kind: output, shape index: {2}]
  %11 = xla_tuple %s8, %s9, %s10
  %s12 = sld [smem:[#allocation0]]
  $region66: #{tpu_custom_call.1} parent=0
    _
  %s14 = ssub.s32 1, %s12
  %s15 = scalar_select 0, %s14, %s12
  $region1: #{tpu_custom_call.1} parent=0
    #allocation5 [shape = 'u8[4096]{0}', space=vmem, size = 0x1000, scoped, tag = 'input window, operand 3, single buffered']
    #allocation6 [shape = 's32[1]{0}', space=sflag, size = 0x4, scoped, tag = 'scoped memory for tpu_custom_call.1']
    #allocation7 [shape = 's32[1]{0}', space=sflag, size = 0x4, scoped, tag = 'scoped memory for tpu_custom_call.1']
    #allocation8 [shape = 'u8[32768]{0}', space=vmem, size = 0x8000, scoped, tag = 'output window, operand 0, single buffered']
    #allocation9 [shape = 'u8[32768]{0}', space=vmem, size = 0x8000, scoped, tag = 'output window, operand 1, single buffered']
    #allocation10 [shape = 's32[1]{0}', space=sflag, size = 0x4, scoped, tag = 'scoped memory for tpu_custom_call.1']
    #allocation11 [shape = 'u8[4096]{0}', space=vmem, size = 0x1000, scoped, tag = 'output window, operand 2, single buffered']
    %16 = vsyncpa [#allocation6], 0
    %17 = vsyncpa [#allocation7], 0
    %18 = vsyncpa [#allocation10], 0
    // Predicated region
    $region2: #{tpu_custom_call.1} parent=1 // pred_check
      _
    $region3: #{tpu_custom_call.1} parent=1 // pred_check_branch
      %20 = sbr.rel (0) target = $region5
    $region4: #{tpu_custom_call.1} parent=1 // pred_region
      _
    $region5: #{tpu_custom_call.1} parent=1 // pred_fallthru
      _
    // Predicated region
    $region6: #{tpu_custom_call.1} parent=1 // pred_check
      _
    $region7: #{tpu_custom_call.1} parent=1 // pred_check_branch
      %22 = sbr.rel (0) target = $region9
    $region8: #{tpu_custom_call.1} parent=1 // pred_region
      _
    $region9: #{tpu_custom_call.1} parent=1 // pred_fallthru
      _
    // Predicated region
    $region10: #{tpu_custom_call.1} parent=1 // pred_check
      _
    $region11: #{tpu_custom_call.1} parent=1 // pred_check_branch
      %24 = sbr.rel (0) target = $region13
    $region12: #{tpu_custom_call.1} parent=1 // pred_region
      _
    $region13: #{tpu_custom_call.1} parent=1 // pred_fallthru
      _
    // Predicated region
    $region14: #{tpu_custom_call.1} parent=1 // pred_check
      _
    $region15: #{tpu_custom_call.1} parent=1 // pred_check_branch
      %26 = sbr.rel (0) target = $region17
    $region16: #{tpu_custom_call.1} parent=1 // pred_region
      %s28 = ssub.s32 128, 128
      %29 = vsyncadd [#allocation6], %s28
      %s31 = sshll.u32 [#allocation5], 4
      %s32 = int_to_ptr.vmem [resolvable:$true] %s31
      %34 = dma.hbm_to_vmem [thread:$0]  %s3, 128, %s32, [#allocation6]
    $region17: #{tpu_custom_call.1} parent=1 // pred_fallthru
      _
    // Predicated region
    $region18: #{tpu_custom_call.1} parent=1 // pred_check
      _
    $region19: #{tpu_custom_call.1} parent=1 // pred_check_branch
      %36 = sbr.rel (0) target = $region21
    $region20: #{tpu_custom_call.1} parent=1 // pred_region
      _
    $region21: #{tpu_custom_call.1} parent=1 // pred_fallthru
      _
    // Predicated region
    $region22: #{tpu_custom_call.1} parent=1 // pred_check
      _
    $region23: #{tpu_custom_call.1} parent=1 // pred_check_branch
      %38 = sbr.rel (0) target = $region25
    $region24: #{tpu_custom_call.1} parent=1 // pred_region
      _
    $region25: #{tpu_custom_call.1} parent=1 // pred_fallthru
      _
    // Predicated region
    $region26: #{tpu_custom_call.1} parent=1 // pred_check
      _
    $region27: #{tpu_custom_call.1} parent=1 // pred_check_branch
      %40 = sbr.rel (0) target = $region29
    $region28: #{tpu_custom_call.1} parent=1 // pred_region
      _
    $region29: #{tpu_custom_call.1} parent=1 // pred_fallthru
      _
    // Predicated region
    $region30: #{tpu_custom_call.1} parent=1 // pred_check
      _
    $region31: #{tpu_custom_call.1} parent=1 // pred_check_branch
      %42 = sbr.rel (0) target = $region33
    $region32: #{tpu_custom_call.1} parent=1 // pred_region
      _
    $region33: #{tpu_custom_call.1} parent=1 // pred_fallthru
      _
    // Predicated region
    $region34: #{tpu_custom_call.1} parent=1 // pred_check
      _
    $region35: #{tpu_custom_call.1} parent=1 // pred_check_branch
      %44 = sbr.rel (0) target = $region37
    $region36: #{tpu_custom_call.1} parent=1 // pred_region
      %45 = dma.done [#allocation6], 128
    $region37: #{tpu_custom_call.1} parent=1 // pred_fallthru
      _
    %p47 = scmp.eq.s32.totalorder 0, 0
    // Predicated region
    $region38: #{tpu_custom_call.1} parent=1 // pred_check
      %p48 = pneg %p47
    $region39: #{tpu_custom_call.1} parent=1 // pred_check_branch
      %50 = sbr.rel (%p48) target = $region41
    $region40: #{tpu_custom_call.1} parent=1 // pred_region
      %v51 = vld [vmem:[%s2] sm:$0xff]
      %vm52 = vcmask 261120
      %53 = vst.msk [vmem:[#allocation2] sm:$0xff] %vm52, %v51
      %v54 = vld [vmem:[#allocation5] sm:$0xff]
      %55 = vst.msk [vmem:[#allocation3] sm:$0xff] %vm52, %v54
      %v56 = vld [vmem:[%s4] sm:$0xff]
      %vm57 = vcmask 7168
      %58 = vst.msk [vmem:[#allocation4] sm:$0xff] %vm57, %v56
    $region41: #{tpu_custom_call.1} parent=1 // pred_fallthru
      _
    %v59 = vlaneseq
    %v60 = vand.u32 %v59, 127
    %vm61 = vcmp.ge.s32.totalorder %v60, 64
    %vm62 = vcmp.lt.s32.totalorder %v60, 96
    %vm63 = vmand %vm61, %vm62
    %v64 = vld [vmem:[#allocation2] sm:$0xff]
    %v65 = vld [vmem:[#allocation3] sm:$0xff]
    %v66 = vld [vmem:[#allocation4] sm:$0xff]
    %v67 = vld [vmem:[%s5] sm:$0xf]
    %v68 = vld [vmem:[%s5 + $0x4] sm:$0xf]
    %v69 = vld [vmem:[%s5 + $0x8] sm:$0xf]
    %v70 = vld [vmem:[%s5 + $0xc] sm:$0xf]
    %v71 = vld [vmem:[%s6] sm:$0x1]
    %v72 = vld [vmem:[%s7] sm:$0x1]
    %v73 = vld [vmem:[%s0] sm:$0xff]
    %v74 = vld [vmem:[%s1] sm:$0xff]
    %76 = vset.pattern.permute.xlu0 0
    %77 = vperm.xlu0 %76, %v66
    %v78 = vpop.permute.xlu0 %77
    %v80 = vmul.f32 %v78, %v73
    %v81 = vpack.c.bf16 %v64, %v64
    %v86 = vunpack.c.l.b16 %v67
    %v87 = vunpack.c.l.b16 %v68
    %v88 = vunpack.c.l.b16 %v69
    %v89 = vunpack.c.l.b16 %v70
    %v90 = vpack.c.b16 %v87, %v86
    %v91 = vpack.c.b16 %v89, %v88
    %vm94 = vcmask 261120
    %v96 = vsel %vm94, %v81, 0
    %98 = vmatprep.subr.bf16.mxu0 0
    %99 = vmatpush1.bf16.msra.mxu0 %v90
    %100 = vmatprep.subr.bf16.mxu0 0
    %101 = vmatpush1.bf16.msra.mxu0 %v91
    %102 = vmatprep.subr.bf16.mxu0 0
    %103 = vmatpush1.bf16.msra.mxu0 0
    %104 = vmatprep.subr.bf16.mxu0 0
    %105 = vmatpush1.bf16.msra.mxu0 0
    %106 = vmatprep.subr.bf16.mxu0 0
    %107 = vmatpush1.bf16.msra.mxu0 0
    %108 = vmatprep.subr.bf16.mxu0 0
    %109 = vmatpush1.bf16.msra.mxu0 0
    %110 = vmatprep.subr.bf16.mxu0 0
    %111 = vmatpush1.bf16.msra.mxu0 0
    %112 = vmatprep.subr.bf16.mxu0 0
    %113 = vmatpush1.bf16.msra.mxu0 0
    %114 = vmatprep.subr.bf16.mxu0 0
    %115 = vmatpush1.bf16.msra.mxu0 0
    %116 = vmatprep.subr.bf16.mxu0 0
    %117 = vmatpush1.bf16.msra.mxu0 0
    %118 = vmatprep.subr.bf16.mxu0 0
    %119 = vmatpush1.bf16.msra.mxu0 0
    %120 = vmatprep.subr.bf16.mxu0 0
    %121 = vmatpush1.bf16.msra.mxu0 0
    %122 = vmatprep.subr.bf16.mxu0 0
    %123 = vmatpush1.bf16.msra.mxu0 0
    %124 = vmatprep.subr.bf16.mxu0 0
    %125 = vmatpush1.bf16.msra.mxu0 0
    %126 = vmatprep.subr.bf16.mxu0 0
    %127 = vmatpush1.bf16.msra.mxu0 0
    %128 = vmatprep.subr.bf16.mxu0 0
    %129 = vmatpush1.bf16.msra.mxu0 0
    %130 = vmatprep.mubr.bf16.mxu0 0
    %131 = vmatmul.mubr.bf16.gmra.mrb[0].mxu0 %v96
    %v132 = vpop.f32.mrb[0].mxu0
    %v133 = vadd.f32 0.0, %v132
    %v134 = vpop.f32.mrb[0].mxu0
    %v135 = vpop.f32.mrb[0].mxu0
    %v136 = vpop.f32.mrb[0].mxu0
    %137 = vdwg.mxu0
    %v138 = vadd.f32 %v80, %v133
    %v140 = vlaneseq
    %v141 = vshrl.u32 %v140, 7
    %v142 = vsub.s32 0, %v141
    %v143 = vrot.slane %v71, %v142
    %v145 = vadd.f32 %v138, %v143
    %v146 = vtanh.pop %v145
    %v147 = vxor.u32 %v145, 2147483648
    %v148 = vmul.f32 %v147, 1.442695
    %v149 = vpow.pop %v148
    %v150 = vadd.f32 %v149, 1.0
    %v151 = vrcp.pop %v150
    %v152 = vmul.f32 1.0, %v151
    %v153 = vsel %vm63, 1, 0
    %vm154 = vcmp.eq.s32.totalorder %v153, 1
    %v155 = vsel %vm154, %v146, %v152
    %157 = vrot.lane.b32.xlu0 %v65, 32
    %v158 = vpop.permute.xlu0 %157
    %v160 = vmul.f32 %v155, %v158
    %162 = vrot.lane.b32.xlu0 %v155, 64
    %v163 = vpop.permute.xlu0 %162
    %v165 = vmul.f32 %v155, %v163
    %167 = vrot.lane.b32.xlu0 %v165, 32
    %v168 = vpop.permute.xlu0 %167
    %v170 = vadd.f32 %v160, %v168
    %v171 = vtanh.pop %v170
    %173 = vrot.lane.b32.xlu0 %v171, 64
    %v174 = vpop.permute.xlu0 %173
    %v176 = vmul.f32 %v155, %v174
    %v178 = vlaneseq
    %v179 = vshrl.u32 %v178, 7
    %v180 = vsub.s32 0, %v179
    %v181 = vrot.slane %v72, %v180
    %182 = vrot.lane.b32.xlu0 %v181, 96
    %v183 = vpop.permute.xlu0 %182
    %v185 = vmul.f32 %v176, %v183
    %187 = vrot.lane.b32.xlu0 %v185, 32
    %v188 = vpop.permute.xlu0 %187
    %v190 = vsel %vm94, %v188, 0.0
    %191 = vadd.xlane.f32.xlu0 %v190
    %v192 = vpop.xlane.xlu0 %191
    %v193 = vadd.f32 %v74, %v192
    %v194 = vxor.u32 %v193, 2147483648
    %v195 = vmul.f32 %v194, 1.442695
    %v196 = vpow.pop %v195
    %v197 = vadd.f32 %v196, 1.0
    %v198 = vrcp.pop %v197
    %v199 = vmul.f32 1.0, %v198
    %201 = vrot.lane.b32.xlu0 %v176, 32
    %v202 = vpop.permute.xlu0 %201
    %204 = vst.msk [vmem:[#allocation8] sm:$0xff] %vm94, %v202
    %206 = vrot.lane.b32.xlu0 %v170, 96
    %v207 = vpop.permute.xlu0 %206
    %209 = vst.msk [vmem:[#allocation9] sm:$0xff] %vm94, %v207
    %s210 = scalar_lea.vmem %s0, 8
    %v211 = vld [vmem:[%s210] sm:$0xff]
    %s212 = scalar_lea.vmem %s1, 8
    %v213 = vld [vmem:[%s212] sm:$0xff]
    %215 = vset.pattern.permute.xlu0 0
    %216 = vperm.xlu0 %215, %v199
    %v217 = vpop.permute.xlu0 %216
    %v219 = vmul.f32 %v217, %v211
    %v220 = vpack.c.bf16 %v176, %v176
    %222 = vrot.lane.b32.xlu0 %v220, 32
    %v223 = vpop.permute.xlu0 %222
    %v225 = vsel %vm94, %v223, 0
    %227 = vmatprep.subr.bf16.mxu0 0
    %228 = vmatpush1.bf16.msra.mxu0 %v90
    %229 = vmatprep.subr.bf16.mxu0 0
    %230 = vmatpush1.bf16.msra.mxu0 %v91
    %231 = vmatprep.subr.bf16.mxu0 0
    %232 = vmatpush1.bf16.msra.mxu0 0
    %233 = vmatprep.subr.bf16.mxu0 0
    %234 = vmatpush1.bf16.msra.mxu0 0
    %235 = vmatprep.subr.bf16.mxu0 0
    %236 = vmatpush1.bf16.msra.mxu0 0
    %237 = vmatprep.subr.bf16.mxu0 0
    %238 = vmatpush1.bf16.msra.mxu0 0
    %239 = vmatprep.subr.bf16.mxu0 0
    %240 = vmatpush1.bf16.msra.mxu0 0
    %241 = vmatprep.subr.bf16.mxu0 0
    %242 = vmatpush1.bf16.msra.mxu0 0
    %243 = vmatprep.subr.bf16.mxu0 0
    %244 = vmatpush1.bf16.msra.mxu0 0
    %245 = vmatprep.subr.bf16.mxu0 0
    %246 = vmatpush1.bf16.msra.mxu0 0
    %247 = vmatprep.subr.bf16.mxu0 0
    %248 = vmatpush1.bf16.msra.mxu0 0
    %249 = vmatprep.subr.bf16.mxu0 0
    %250 = vmatpush1.bf16.msra.mxu0 0
    %251 = vmatprep.subr.bf16.mxu0 0
    %252 = vmatpush1.bf16.msra.mxu0 0
    %253 = vmatprep.subr.bf16.mxu0 0
    %254 = vmatpush1.bf16.msra.mxu0 0
    %255 = vmatprep.subr.bf16.mxu0 0
    %256 = vmatpush1.bf16.msra.mxu0 0
    %257 = vmatprep.subr.bf16.mxu0 0
    %258 = vmatpush1.bf16.msra.mxu0 0
    %259 = vmatprep.mubr.bf16.mxu0 0
    %260 = vmatmul.mubr.bf16.gmra.mrb[0].mxu0 %v225
    %v261 = vpop.f32.mrb[0].mxu0
    %v262 = vadd.f32 0.0, %v261
    %v263 = vpop.f32.mrb[0].mxu0
    %v264 = vpop.f32.mrb[0].mxu0
    %v265 = vpop.f32.mrb[0].mxu0
    %266 = vdwg.mxu0
    %v267 = vadd.f32 %v219, %v262
    %v268 = vadd.f32 %v267, %v143
    %v269 = vtanh.pop %v268
    %v270 = vxor.u32 %v268, 2147483648
    %v271 = vmul.f32 %v270, 1.442695
    %v272 = vpow.pop %v271
    %v273 = vadd.f32 %v272, 1.0
    %v274 = vrcp.pop %v273
    %v275 = vmul.f32 1.0, %v274
    %v276 = vsel %vm154, %v269, %v275
    %v277 = vmul.f32 %v276, %v170
    %279 = vrot.lane.b32.xlu0 %v276, 64
    %v280 = vpop.permute.xlu0 %279
    %v282 = vmul.f32 %v276, %v280
    %284 = vrot.lane.b32.xlu0 %v282, 32
    %v285 = vpop.permute.xlu0 %284
    %v287 = vadd.f32 %v277, %v285
    %v288 = vtanh.pop %v287
    %290 = vrot.lane.b32.xlu0 %v288, 64
    %v291 = vpop.permute.xlu0 %290
    %v293 = vmul.f32 %v276, %v291
    %v294 = vmul.f32 %v293, %v183
    %296 = vrot.lane.b32.xlu0 %v294, 32
    %v297 = vpop.permute.xlu0 %296
    %v299 = vsel %vm94, %v297, 0.0
    %300 = vadd.xlane.f32.xlu0 %v299
    %v301 = vpop.xlane.xlu0 %300
    %v302 = vadd.f32 %v213, %v301
    %v303 = vxor.u32 %v302, 2147483648
    %v304 = vmul.f32 %v303, 1.442695
    %v305 = vpow.pop %v304
    %v306 = vadd.f32 %v305, 1.0
    %v307 = vrcp.pop %v306
    %v308 = vmul.f32 1.0, %v307
    %310 = vrot.lane.b32.xlu0 %v293, 32
    %v311 = vpop.permute.xlu0 %310
    %s313 = scalar_lea.vmem [#allocation8], 8
    %314 = vst.msk [vmem:[%s313] sm:$0xff] %vm94, %v311
    %316 = vrot.lane.b32.xlu0 %v287, 96
    %v317 = vpop.permute.xlu0 %316
    %s319 = scalar_lea.vmem [#allocation9], 8
    %320 = vst.msk [vmem:[%s319] sm:$0xff] %vm94, %v317
    %s321 = scalar_lea.vmem %s0, 16
    %v322 = vld [vmem:[%s321] sm:$0xff]
    %s323 = scalar_lea.vmem %s1, 16
    %v324 = vld [vmem:[%s323] sm:$0xff]
    %326 = vset.pattern.permute.xlu0 0
    %327 = vperm.xlu0 %326, %v308
    %v328 = vpop.permute.xlu0 %327
    %v330 = vmul.f32 %v328, %v322
    %v331 = vpack.c.bf16 %v293, %v293
    %333 = vrot.lane.b32.xlu0 %v331, 32
    %v334 = vpop.permute.xlu0 %333
    %v336 = vsel %vm94, %v334, 0
    %338 = vmatprep.subr.bf16.mxu0 0
    %339 = vmatpush1.bf16.msra.mxu0 %v90
    %340 = vmatprep.subr.bf16.mxu0 0
    %341 = vmatpush1.bf16.msra.mxu0 %v91
    %342 = vmatprep.subr.bf16.mxu0 0
    %343 = vmatpush1.bf16.msra.mxu0 0
    %344 = vmatprep.subr.bf16.mxu0 0
    %345 = vmatpush1.bf16.msra.mxu0 0
    %346 = vmatprep.subr.bf16.mxu0 0
    %347 = vmatpush1.bf16.msra.mxu0 0
    %348 = vmatprep.subr.bf16.mxu0 0
    %349 = vmatpush1.bf16.msra.mxu0 0
    %350 = vmatprep.subr.bf16.mxu0 0
    %351 = vmatpush1.bf16.msra.mxu0 0
    %352 = vmatprep.subr.bf16.mxu0 0
    %353 = vmatpush1.bf16.msra.mxu0 0
    %354 = vmatprep.subr.bf16.mxu0 0
    %355 = vmatpush1.bf16.msra.mxu0 0
    %356 = vmatprep.subr.bf16.mxu0 0
    %357 = vmatpush1.bf16.msra.mxu0 0
    %358 = vmatprep.subr.bf16.mxu0 0
    %359 = vmatpush1.bf16.msra.mxu0 0
    %360 = vmatprep.subr.bf16.mxu0 0
    %361 = vmatpush1.bf16.msra.mxu0 0
    %362 = vmatprep.subr.bf16.mxu0 0
    %363 = vmatpush1.bf16.msra.mxu0 0
    %364 = vmatprep.subr.bf16.mxu0 0
    %365 = vmatpush1.bf16.msra.mxu0 0
    %366 = vmatprep.subr.bf16.mxu0 0
    %367 = vmatpush1.bf16.msra.mxu0 0
    %368 = vmatprep.subr.bf16.mxu0 0
    %369 = vmatpush1.bf16.msra.mxu0 0
    %370 = vmatprep.mubr.bf16.mxu0 0
    %371 = vmatmul.mubr.bf16.gmra.mrb[0].mxu0 %v336
    %v372 = vpop.f32.mrb[0].mxu0
    %v373 = vadd.f32 0.0, %v372
    %v374 = vpop.f32.mrb[0].mxu0
    %v375 = vpop.f32.mrb[0].mxu0
    %v376 = vpop.f32.mrb[0].mxu0
    %377 = vdwg.mxu0
    %v378 = vadd.f32 %v330, %v373
    %v379 = vadd.f32 %v378, %v143
    %v380 = vtanh.pop %v379
    %v381 = vxor.u32 %v379, 2147483648
    %v382 = vmul.f32 %v381, 1.442695
    %v383 = vpow.pop %v382
    %v384 = vadd.f32 %v383, 1.0
    %v385 = vrcp.pop %v384
    %v386 = vmul.f32 1.0, %v385
    %v387 = vsel %vm154, %v380, %v386
    %v388 = vmul.f32 %v387, %v287
    %390 = vrot.lane.b32.xlu0 %v387, 64
    %v391 = vpop.permute.xlu0 %390
    %v393 = vmul.f32 %v387, %v391
    %395 = vrot.lane.b32.xlu0 %v393, 32
    %v396 = vpop.permute.xlu0 %395
    %v398 = vadd.f32 %v388, %v396
    %v399 = vtanh.pop %v398
    %401 = vrot.lane.b32.xlu0 %v399, 64
    %v402 = vpop.permute.xlu0 %401
    %v404 = vmul.f32 %v387, %v402
    %v405 = vmul.f32 %v404, %v183
    %407 = vrot.lane.b32.xlu0 %v405, 32
    %v408 = vpop.permute.xlu0 %407
    %v410 = vsel %vm94, %v408, 0.0
    %411 = vadd.xlane.f32.xlu0 %v410
    %v412 = vpop.xlane.xlu0 %411
    %v413 = vadd.f32 %v324, %v412
    %v414 = vxor.u32 %v413, 2147483648
    %v415 = vmul.f32 %v414, 1.442695
    %v416 = vpow.pop %v415
    %v417 = vadd.f32 %v416, 1.0
    %v418 = vrcp.pop %v417
    %v419 = vmul.f32 1.0, %v418
    %421 = vrot.lane.b32.xlu0 %v404, 32
    %v422 = vpop.permute.xlu0 %421
    %s424 = scalar_lea.vmem [#allocation8], 16
    %425 = vst.msk [vmem:[%s424] sm:$0xff] %vm94, %v422
    %427 = vrot.lane.b32.xlu0 %v398, 96
    %v428 = vpop.permute.xlu0 %427
    %s430 = scalar_lea.vmem [#allocation9], 16
    %431 = vst.msk [vmem:[%s430] sm:$0xff] %vm94, %v428
    %s432 = scalar_lea.vmem %s0, 24
    %v433 = vld [vmem:[%s432] sm:$0xff]
    %s434 = scalar_lea.vmem %s1, 24
    %v435 = vld [vmem:[%s434] sm:$0xff]
    %437 = vset.pattern.permute.xlu0 0
    %438 = vperm.xlu0 %437, %v419
    %v439 = vpop.permute.xlu0 %438
    %v441 = vmul.f32 %v439, %v433
    %v442 = vpack.c.bf16 %v404, %v404
    %444 = vrot.lane.b32.xlu0 %v442, 32
    %v445 = vpop.permute.xlu0 %444
    %v447 = vsel %vm94, %v445, 0
    %449 = vmatprep.subr.bf16.mxu0 0
    %450 = vmatpush1.bf16.msra.mxu0 %v90
    %451 = vmatprep.subr.bf16.mxu0 0
    %452 = vmatpush1.bf16.msra.mxu0 %v91
    %453 = vmatprep.subr.bf16.mxu0 0
    %454 = vmatpush1.bf16.msra.mxu0 0
    %455 = vmatprep.subr.bf16.mxu0 0
    %456 = vmatpush1.bf16.msra.mxu0 0
    %457 = vmatprep.subr.bf16.mxu0 0
    %458 = vmatpush1.bf16.msra.mxu0 0
    %459 = vmatprep.subr.bf16.mxu0 0
    %460 = vmatpush1.bf16.msra.mxu0 0
    %461 = vmatprep.subr.bf16.mxu0 0
    %462 = vmatpush1.bf16.msra.mxu0 0
    %463 = vmatprep.subr.bf16.mxu0 0
    %464 = vmatpush1.bf16.msra.mxu0 0
    %465 = vmatprep.subr.bf16.mxu0 0
    %466 = vmatpush1.bf16.msra.mxu0 0
    %467 = vmatprep.subr.bf16.mxu0 0
    %468 = vmatpush1.bf16.msra.mxu0 0
    %469 = vmatprep.subr.bf16.mxu0 0
    %470 = vmatpush1.bf16.msra.mxu0 0
    %471 = vmatprep.subr.bf16.mxu0 0
    %472 = vmatpush1.bf16.msra.mxu0 0
    %473 = vmatprep.subr.bf16.mxu0 0
    %474 = vmatpush1.bf16.msra.mxu0 0
    %475 = vmatprep.subr.bf16.mxu0 0
    %476 = vmatpush1.bf16.msra.mxu0 0
    %477 = vmatprep.subr.bf16.mxu0 0
    %478 = vmatpush1.bf16.msra.mxu0 0
    %479 = vmatprep.subr.bf16.mxu0 0
    %480 = vmatpush1.bf16.msra.mxu0 0
    %481 = vmatprep.mubr.bf16.mxu0 0
    %482 = vmatmul.mubr.bf16.gmra.mrb[0].mxu0 %v447
    %v483 = vpop.f32.mrb[0].mxu0
    %v484 = vadd.f32 0.0, %v483
    %v485 = vpop.f32.mrb[0].mxu0
    %v486 = vpop.f32.mrb[0].mxu0
    %v487 = vpop.f32.mrb[0].mxu0
    %488 = vdwg.mxu0
    %v489 = vadd.f32 %v441, %v484
    %v490 = vadd.f32 %v489, %v143
    %v491 = vtanh.pop %v490
    %v492 = vxor.u32 %v490, 2147483648
    %v493 = vmul.f32 %v492, 1.442695
    %v494 = vpow.pop %v493
    %v495 = vadd.f32 %v494, 1.0
    %v496 = vrcp.pop %v495
    %v497 = vmul.f32 1.0, %v496
    %v498 = vsel %vm154, %v491, %v497
    %v499 = vmul.f32 %v498, %v398
    %501 = vrot.lane.b32.xlu0 %v498, 64
    %v502 = vpop.permute.xlu0 %501
    %v504 = vmul.f32 %v498, %v502
    %506 = vrot.lane.b32.xlu0 %v504, 32
    %v507 = vpop.permute.xlu0 %506
    %v509 = vadd.f32 %v499, %v507
    %v510 = vtanh.pop %v509
    %512 = vrot.lane.b32.xlu0 %v510, 64
    %v513 = vpop.permute.xlu0 %512
    %v515 = vmul.f32 %v498, %v513
    %v516 = vmul.f32 %v515, %v183
    %518 = vrot.lane.b32.xlu0 %v516, 32
    %v519 = vpop.permute.xlu0 %518
    %v521 = vsel %vm94, %v519, 0.0
    %522 = vadd.xlane.f32.xlu0 %v521
    %v523 = vpop.xlane.xlu0 %522
    %v524 = vadd.f32 %v435, %v523
    %v525 = vxor.u32 %v524, 2147483648
    %v526 = vmul.f32 %v525, 1.442695
    %v527 = vpow.pop %v526
    %v528 = vadd.f32 %v527, 1.0
    %v529 = vrcp.pop %v528
    %v530 = vmul.f32 1.0, %v529
    %532 = vrot.lane.b32.xlu0 %v515, 32
    %v533 = vpop.permute.xlu0 %532
    %s535 = scalar_lea.vmem [#allocation8], 24
    %536 = vst.msk [vmem:[%s535] sm:$0xff] %vm94, %v533
    %538 = vrot.lane.b32.xlu0 %v509, 96
    %v539 = vpop.permute.xlu0 %538
    %s541 = scalar_lea.vmem [#allocation9], 24
    %542 = vst.msk [vmem:[%s541] sm:$0xff] %vm94, %v539
    %s543 = scalar_lea.vmem %s0, 32
    %v544 = vld [vmem:[%s543] sm:$0xff]
    %s545 = scalar_lea.vmem %s1, 32
    %v546 = vld [vmem:[%s545] sm:$0xff]
    %548 = vset.pattern.permute.xlu0 0
    %549 = vperm.xlu0 %548, %v530
    %v550 = vpop.permute.xlu0 %549
    %v552 = vmul.f32 %v550, %v544
    %v553 = vpack.c.bf16 %v515, %v515
    %555 = vrot.lane.b32.xlu0 %v553, 32
    %v556 = vpop.permute.xlu0 %555
    %v558 = vsel %vm94, %v556, 0
    %560 = vmatprep.subr.bf16.mxu0 0
    %561 = vmatpush1.bf16.msra.mxu0 %v90
    %562 = vmatprep.subr.bf16.mxu0 0
    %563 = vmatpush1.bf16.msra.mxu0 %v91
    %564 = vmatprep.subr.bf16.mxu0 0
    %565 = vmatpush1.bf16.msra.mxu0 0
    %566 = vmatprep.subr.bf16.mxu0 0
    %567 = vmatpush1.bf16.msra.mxu0 0
    %568 = vmatprep.subr.bf16.mxu0 0
    %569 = vmatpush1.bf16.msra.mxu0 0
    %570 = vmatprep.subr.bf16.mxu0 0
    %571 = vmatpush1.bf16.msra.mxu0 0
    %572 = vmatprep.subr.bf16.mxu0 0
    %573 = vmatpush1.bf16.msra.mxu0 0
    %574 = vmatprep.subr.bf16.mxu0 0
    %575 = vmatpush1.bf16.msra.mxu0 0
    %576 = vmatprep.subr.bf16.mxu0 0
    %577 = vmatpush1.bf16.msra.mxu0 0
    %578 = vmatprep.subr.bf16.mxu0 0
    %579 = vmatpush1.bf16.msra.mxu0 0
    %580 = vmatprep.subr.bf16.mxu0 0
    %581 = vmatpush1.bf16.msra.mxu0 0
    %582 = vmatprep.subr.bf16.mxu0 0
    %583 = vmatpush1.bf16.msra.mxu0 0
    %584 = vmatprep.subr.bf16.mxu0 0
    %585 = vmatpush1.bf16.msra.mxu0 0
    %586 = vmatprep.subr.bf16.mxu0 0
    %587 = vmatpush1.bf16.msra.mxu0 0
    %588 = vmatprep.subr.bf16.mxu0 0
    %589 = vmatpush1.bf16.msra.mxu0 0
    %590 = vmatprep.subr.bf16.mxu0 0
    %591 = vmatpush1.bf16.msra.mxu0 0
    %592 = vmatprep.mubr.bf16.mxu0 0
    %593 = vmatmul.mubr.bf16.gmra.mrb[0].mxu0 %v558
    %v594 = vpop.f32.mrb[0].mxu0
    %v595 = vadd.f32 0.0, %v594
    %v596 = vpop.f32.mrb[0].mxu0
    %v597 = vpop.f32.mrb[0].mxu0
    %v598 = vpop.f32.mrb[0].mxu0
    %599 = vdwg.mxu0
    %v600 = vadd.f32 %v552, %v595
    %v601 = vadd.f32 %v600, %v143
    %v602 = vtanh.pop %v601
    %v603 = vxor.u32 %v601, 2147483648
    %v604 = vmul.f32 %v603, 1.442695
    %v605 = vpow.pop %v604
    %v606 = vadd.f32 %v605, 1.0
    %v607 = vrcp.pop %v606
    %v608 = vmul.f32 1.0, %v607
    %v609 = vsel %vm154, %v602, %v608
    %v610 = vmul.f32 %v609, %v509
    %612 = vrot.lane.b32.xlu0 %v609, 64
    %v613 = vpop.permute.xlu0 %612
    %v615 = vmul.f32 %v609, %v613
    %617 = vrot.lane.b32.xlu0 %v615, 32
    %v618 = vpop.permute.xlu0 %617
    %v620 = vadd.f32 %v610, %v618
    %v621 = vtanh.pop %v620
    %623 = vrot.lane.b32.xlu0 %v621, 64
    %v624 = vpop.permute.xlu0 %623
    %v626 = vmul.f32 %v609, %v624
    %v627 = vmul.f32 %v626, %v183
    %629 = vrot.lane.b32.xlu0 %v627, 32
    %v630 = vpop.permute.xlu0 %629
    %v632 = vsel %vm94, %v630, 0.0
    %633 = vadd.xlane.f32.xlu0 %v632
    %v634 = vpop.xlane.xlu0 %633
    %v635 = vadd.f32 %v546, %v634
    %v636 = vxor.u32 %v635, 2147483648
    %v637 = vmul.f32 %v636, 1.442695
    %v638 = vpow.pop %v637
    %v639 = vadd.f32 %v638, 1.0
    %v640 = vrcp.pop %v639
    %v641 = vmul.f32 1.0, %v640
    %643 = vrot.lane.b32.xlu0 %v626, 32
    %v644 = vpop.permute.xlu0 %643
    %s646 = scalar_lea.vmem [#allocation8], 32
    %647 = vst.msk [vmem:[%s646] sm:$0xff] %vm94, %v644
    %649 = vrot.lane.b32.xlu0 %v620, 96
    %v650 = vpop.permute.xlu0 %649
    %s652 = scalar_lea.vmem [#allocation9], 32
    %653 = vst.msk [vmem:[%s652] sm:$0xff] %vm94, %v650
    %s654 = scalar_lea.vmem %s0, 40
    %v655 = vld [vmem:[%s654] sm:$0xff]
    %s656 = scalar_lea.vmem %s1, 40
    %v657 = vld [vmem:[%s656] sm:$0xff]
    %659 = vset.pattern.permute.xlu0 0
    %660 = vperm.xlu0 %659, %v641
    %v661 = vpop.permute.xlu0 %660
    %v663 = vmul.f32 %v661, %v655
    %v664 = vpack.c.bf16 %v626, %v626
    %666 = vrot.lane.b32.xlu0 %v664, 32
    %v667 = vpop.permute.xlu0 %666
    %v669 = vsel %vm94, %v667, 0
    %671 = vmatprep.subr.bf16.mxu0 0
    %672 = vmatpush1.bf16.msra.mxu0 %v90
    %673 = vmatprep.subr.bf16.mxu0 0
    %674 = vmatpush1.bf16.msra.mxu0 %v91
    %675 = vmatprep.subr.bf16.mxu0 0
    %676 = vmatpush1.bf16.msra.mxu0 0
    %677 = vmatprep.subr.bf16.mxu0 0
    %678 = vmatpush1.bf16.msra.mxu0 0
    %679 = vmatprep.subr.bf16.mxu0 0
    %680 = vmatpush1.bf16.msra.mxu0 0
    %681 = vmatprep.subr.bf16.mxu0 0
    %682 = vmatpush1.bf16.msra.mxu0 0
    %683 = vmatprep.subr.bf16.mxu0 0
    %684 = vmatpush1.bf16.msra.mxu0 0
    %685 = vmatprep.subr.bf16.mxu0 0
    %686 = vmatpush1.bf16.msra.mxu0 0
    %687 = vmatprep.subr.bf16.mxu0 0
    %688 = vmatpush1.bf16.msra.mxu0 0
    %689 = vmatprep.subr.bf16.mxu0 0
    %690 = vmatpush1.bf16.msra.mxu0 0
    %691 = vmatprep.subr.bf16.mxu0 0
    %692 = vmatpush1.bf16.msra.mxu0 0
    %693 = vmatprep.subr.bf16.mxu0 0
    %694 = vmatpush1.bf16.msra.mxu0 0
    %695 = vmatprep.subr.bf16.mxu0 0
    %696 = vmatpush1.bf16.msra.mxu0 0
    %697 = vmatprep.subr.bf16.mxu0 0
    %698 = vmatpush1.bf16.msra.mxu0 0
    %699 = vmatprep.subr.bf16.mxu0 0
    %700 = vmatpush1.bf16.msra.mxu0 0
    %701 = vmatprep.subr.bf16.mxu0 0
    %702 = vmatpush1.bf16.msra.mxu0 0
    %703 = vmatprep.mubr.bf16.mxu0 0
    %704 = vmatmul.mubr.bf16.gmra.mrb[0].mxu0 %v669
    %v705 = vpop.f32.mrb[0].mxu0
    %v706 = vadd.f32 0.0, %v705
    %v707 = vpop.f32.mrb[0].mxu0
    %v708 = vpop.f32.mrb[0].mxu0
    %v709 = vpop.f32.mrb[0].mxu0
    %710 = vdwg.mxu0
    %v711 = vadd.f32 %v663, %v706
    %v712 = vadd.f32 %v711, %v143
    %v713 = vtanh.pop %v712
    %v714 = vxor.u32 %v712, 2147483648
    %v715 = vmul.f32 %v714, 1.442695
    %v716 = vpow.pop %v715
    %v717 = vadd.f32 %v716, 1.0
    %v718 = vrcp.pop %v717
    %v719 = vmul.f32 1.0, %v718
    %v720 = vsel %vm154, %v713, %v719
    %v721 = vmul.f32 %v720, %v620
    %723 = vrot.lane.b32.xlu0 %v720, 64
    %v724 = vpop.permute.xlu0 %723
    %v726 = vmul.f32 %v720, %v724
    %728 = vrot.lane.b32.xlu0 %v726, 32
    %v729 = vpop.permute.xlu0 %728
    %v731 = vadd.f32 %v721, %v729
    %v732 = vtanh.pop %v731
    %734 = vrot.lane.b32.xlu0 %v732, 64
    %v735 = vpop.permute.xlu0 %734
    %v737 = vmul.f32 %v720, %v735
    %v738 = vmul.f32 %v737, %v183
    %740 = vrot.lane.b32.xlu0 %v738, 32
    %v741 = vpop.permute.xlu0 %740
    %v743 = vsel %vm94, %v741, 0.0
    %744 = vadd.xlane.f32.xlu0 %v743
    %v745 = vpop.xlane.xlu0 %744
    %v746 = vadd.f32 %v657, %v745
    %v747 = vxor.u32 %v746, 2147483648
    %v748 = vmul.f32 %v747, 1.442695
    %v749 = vpow.pop %v748
    %v750 = vadd.f32 %v749, 1.0
    %v751 = vrcp.pop %v750
    %v752 = vmul.f32 1.0, %v751
    %754 = vrot.lane.b32.xlu0 %v737, 32
    %v755 = vpop.permute.xlu0 %754
    %s757 = scalar_lea.vmem [#allocation8], 40
    %758 = vst.msk [vmem:[%s757] sm:$0xff] %vm94, %v755
    %760 = vrot.lane.b32.xlu0 %v731, 96
    %v761 = vpop.permute.xlu0 %760
    %s763 = scalar_lea.vmem [#allocation9], 40
    %764 = vst.msk [vmem:[%s763] sm:$0xff] %vm94, %v761
    %s765 = scalar_lea.vmem %s0, 48
    %v766 = vld [vmem:[%s765] sm:$0xff]
    %s767 = scalar_lea.vmem %s1, 48
    %v768 = vld [vmem:[%s767] sm:$0xff]
    %770 = vset.pattern.permute.xlu0 0
    %771 = vperm.xlu0 %770, %v752
    %v772 = vpop.permute.xlu0 %771
    %v774 = vmul.f32 %v772, %v766
    %v775 = vpack.c.bf16 %v737, %v737
    %777 = vrot.lane.b32.xlu0 %v775, 32
    %v778 = vpop.permute.xlu0 %777
    %v780 = vsel %vm94, %v778, 0
    %782 = vmatprep.subr.bf16.mxu0 0
    %783 = vmatpush1.bf16.msra.mxu0 %v90
    %784 = vmatprep.subr.bf16.mxu0 0
    %785 = vmatpush1.bf16.msra.mxu0 %v91
    %786 = vmatprep.subr.bf16.mxu0 0
    %787 = vmatpush1.bf16.msra.mxu0 0
    %788 = vmatprep.subr.bf16.mxu0 0
    %789 = vmatpush1.bf16.msra.mxu0 0
    %790 = vmatprep.subr.bf16.mxu0 0
    %791 = vmatpush1.bf16.msra.mxu0 0
    %792 = vmatprep.subr.bf16.mxu0 0
    %793 = vmatpush1.bf16.msra.mxu0 0
    %794 = vmatprep.subr.bf16.mxu0 0
    %795 = vmatpush1.bf16.msra.mxu0 0
    %796 = vmatprep.subr.bf16.mxu0 0
    %797 = vmatpush1.bf16.msra.mxu0 0
    %798 = vmatprep.subr.bf16.mxu0 0
    %799 = vmatpush1.bf16.msra.mxu0 0
    %800 = vmatprep.subr.bf16.mxu0 0
    %801 = vmatpush1.bf16.msra.mxu0 0
    %802 = vmatprep.subr.bf16.mxu0 0
    %803 = vmatpush1.bf16.msra.mxu0 0
    %804 = vmatprep.subr.bf16.mxu0 0
    %805 = vmatpush1.bf16.msra.mxu0 0
    %806 = vmatprep.subr.bf16.mxu0 0
    %807 = vmatpush1.bf16.msra.mxu0 0
    %808 = vmatprep.subr.bf16.mxu0 0
    %809 = vmatpush1.bf16.msra.mxu0 0
    %810 = vmatprep.subr.bf16.mxu0 0
    %811 = vmatpush1.bf16.msra.mxu0 0
    %812 = vmatprep.subr.bf16.mxu0 0
    %813 = vmatpush1.bf16.msra.mxu0 0
    %814 = vmatprep.mubr.bf16.mxu0 0
    %815 = vmatmul.mubr.bf16.gmra.mrb[0].mxu0 %v780
    %v816 = vpop.f32.mrb[0].mxu0
    %v817 = vadd.f32 0.0, %v816
    %v818 = vpop.f32.mrb[0].mxu0
    %v819 = vpop.f32.mrb[0].mxu0
    %v820 = vpop.f32.mrb[0].mxu0
    %821 = vdwg.mxu0
    %v822 = vadd.f32 %v774, %v817
    %v823 = vadd.f32 %v822, %v143
    %v824 = vtanh.pop %v823
    %v825 = vxor.u32 %v823, 2147483648
    %v826 = vmul.f32 %v825, 1.442695
    %v827 = vpow.pop %v826
    %v828 = vadd.f32 %v827, 1.0
    %v829 = vrcp.pop %v828
    %v830 = vmul.f32 1.0, %v829
    %v831 = vsel %vm154, %v824, %v830
    %v832 = vmul.f32 %v831, %v731
    %834 = vrot.lane.b32.xlu0 %v831, 64
    %v835 = vpop.permute.xlu0 %834
    %v837 = vmul.f32 %v831, %v835
    %839 = vrot.lane.b32.xlu0 %v837, 32
    %v840 = vpop.permute.xlu0 %839
    %v842 = vadd.f32 %v832, %v840
    %v843 = vtanh.pop %v842
    %845 = vrot.lane.b32.xlu0 %v843, 64
    %v846 = vpop.permute.xlu0 %845
    %v848 = vmul.f32 %v831, %v846
    %v849 = vmul.f32 %v848, %v183
    %851 = vrot.lane.b32.xlu0 %v849, 32
    %v852 = vpop.permute.xlu0 %851
    %v854 = vsel %vm94, %v852, 0.0
    %855 = vadd.xlane.f32.xlu0 %v854
    %v856 = vpop.xlane.xlu0 %855
    %v857 = vadd.f32 %v768, %v856
    %v858 = vxor.u32 %v857, 2147483648
    %v859 = vmul.f32 %v858, 1.442695
    %v860 = vpow.pop %v859
    %v861 = vadd.f32 %v860, 1.0
    %v862 = vrcp.pop %v861
    %v863 = vmul.f32 1.0, %v862
    %865 = vrot.lane.b32.xlu0 %v848, 32
    %v866 = vpop.permute.xlu0 %865
    %s868 = scalar_lea.vmem [#allocation8], 48
    %869 = vst.msk [vmem:[%s868] sm:$0xff] %vm94, %v866
    %871 = vrot.lane.b32.xlu0 %v842, 96
    %v872 = vpop.permute.xlu0 %871
    %s874 = scalar_lea.vmem [#allocation9], 48
    %875 = vst.msk [vmem:[%s874] sm:$0xff] %vm94, %v872
    %s876 = scalar_lea.vmem %s0, 56
    %v877 = vld [vmem:[%s876] sm:$0xff]
    %s878 = scalar_lea.vmem %s1, 56
    %v879 = vld [vmem:[%s878] sm:$0xff]
    %881 = vset.pattern.permute.xlu0 0
    %882 = vperm.xlu0 %881, %v863
    %v883 = vpop.permute.xlu0 %882
    %v885 = vmul.f32 %v883, %v877
    %v886 = vpack.c.bf16 %v848, %v848
    %888 = vrot.lane.b32.xlu0 %v886, 32
    %v889 = vpop.permute.xlu0 %888
    %v891 = vsel %vm94, %v889, 0
    %893 = vmatprep.subr.bf16.mxu0 0
    %894 = vmatpush1.bf16.msra.mxu0 %v90
    %895 = vmatprep.subr.bf16.mxu0 0
    %896 = vmatpush1.bf16.msra.mxu0 %v91
    %897 = vmatprep.subr.bf16.mxu0 0
    %898 = vmatpush1.bf16.msra.mxu0 0
    %899 = vmatprep.subr.bf16.mxu0 0
    %900 = vmatpush1.bf16.msra.mxu0 0
    %901 = vmatprep.subr.bf16.mxu0 0
    %902 = vmatpush1.bf16.msra.mxu0 0
    %903 = vmatprep.subr.bf16.mxu0 0
    %904 = vmatpush1.bf16.msra.mxu0 0
    %905 = vmatprep.subr.bf16.mxu0 0
    %906 = vmatpush1.bf16.msra.mxu0 0
    %907 = vmatprep.subr.bf16.mxu0 0
    %908 = vmatpush1.bf16.msra.mxu0 0
    %909 = vmatprep.subr.bf16.mxu0 0
    %910 = vmatpush1.bf16.msra.mxu0 0
    %911 = vmatprep.subr.bf16.mxu0 0
    %912 = vmatpush1.bf16.msra.mxu0 0
    %913 = vmatprep.subr.bf16.mxu0 0
    %914 = vmatpush1.bf16.msra.mxu0 0
    %915 = vmatprep.subr.bf16.mxu0 0
    %916 = vmatpush1.bf16.msra.mxu0 0
    %917 = vmatprep.subr.bf16.mxu0 0
    %918 = vmatpush1.bf16.msra.mxu0 0
    %919 = vmatprep.subr.bf16.mxu0 0
    %920 = vmatpush1.bf16.msra.mxu0 0
    %921 = vmatprep.subr.bf16.mxu0 0
    %922 = vmatpush1.bf16.msra.mxu0 0
    %923 = vmatprep.subr.bf16.mxu0 0
    %924 = vmatpush1.bf16.msra.mxu0 0
    %925 = vmatprep.mubr.bf16.mxu0 0
    %926 = vmatmul.mubr.bf16.gmra.mrb[0].mxu0 %v891
    %v927 = vpop.f32.mrb[0].mxu0
    %v928 = vadd.f32 0.0, %v927
    %v929 = vpop.f32.mrb[0].mxu0
    %v930 = vpop.f32.mrb[0].mxu0
    %v931 = vpop.f32.mrb[0].mxu0
    %932 = vdwg.mxu0
    %v933 = vadd.f32 %v885, %v928
    %v934 = vadd.f32 %v933, %v143
    %v935 = vtanh.pop %v934
    %v936 = vxor.u32 %v934, 2147483648
    %v937 = vmul.f32 %v936, 1.442695
    %v938 = vpow.pop %v937
    %v939 = vadd.f32 %v938, 1.0
    %v940 = vrcp.pop %v939
    %v941 = vmul.f32 1.0, %v940
    %v942 = vsel %vm154, %v935, %v941
    %v943 = vmul.f32 %v942, %v842
    %945 = vrot.lane.b32.xlu0 %v942, 64
    %v946 = vpop.permute.xlu0 %945
    %v948 = vmul.f32 %v942, %v946
    %950 = vrot.lane.b32.xlu0 %v948, 32
    %v951 = vpop.permute.xlu0 %950
    %v953 = vadd.f32 %v943, %v951
    %v954 = vtanh.pop %v953
    %956 = vrot.lane.b32.xlu0 %v954, 64
    %v957 = vpop.permute.xlu0 %956
    %v959 = vmul.f32 %v942, %v957
    %v960 = vmul.f32 %v959, %v183
    %962 = vrot.lane.b32.xlu0 %v960, 32
    %v963 = vpop.permute.xlu0 %962
    %v965 = vsel %vm94, %v963, 0.0
    %966 = vadd.xlane.f32.xlu0 %v965
    %v967 = vpop.xlane.xlu0 %966
    %v968 = vadd.f32 %v879, %v967
    %v969 = vxor.u32 %v968, 2147483648
    %v970 = vmul.f32 %v969, 1.442695
    %v971 = vpow.pop %v970
    %v972 = vadd.f32 %v971, 1.0
    %v973 = vrcp.pop %v972
    %v974 = vmul.f32 1.0, %v973
    %976 = vrot.lane.b32.xlu0 %v959, 32
    %v977 = vpop.permute.xlu0 %976
    %s979 = scalar_lea.vmem [#allocation8], 56
    %980 = vst.msk [vmem:[%s979] sm:$0xff] %vm94, %v977
    %982 = vrot.lane.b32.xlu0 %v953, 96
    %v983 = vpop.permute.xlu0 %982
    %s985 = scalar_lea.vmem [#allocation9], 56
    %986 = vst.msk [vmem:[%s985] sm:$0xff] %vm94, %v983
    %987 = vrot.lane.b32.xlu0 %v308, 1
    %v988 = vpop.permute.xlu0 %987
    %990 = vrot.lane.b32.xlu0 %v419, 2
    %v991 = vpop.permute.xlu0 %990
    %993 = vrot.lane.b32.xlu0 %v530, 3
    %v994 = vpop.permute.xlu0 %993
    %996 = vrot.lane.b32.xlu0 %v641, 4
    %v997 = vpop.permute.xlu0 %996
    %999 = vrot.lane.b32.xlu0 %v752, 5
    %v1000 = vpop.permute.xlu0 %999
    %1002 = vrot.lane.b32.xlu0 %v863, 6
    %v1003 = vpop.permute.xlu0 %1002
    %1006 = vrot.lane.b32.xlu0 %v974, 7
    %v1007 = vpop.permute.xlu0 %1006
    %vm1009 = vcmask 7168
    %v1010 = vsel %vm1009, %v199, %v988
    %vm1011 = vcmask 15360
    %v1012 = vsel %vm1011, %v1010, %v991
    %vm1013 = vcmask 23552
    %v1014 = vsel %vm1013, %v1012, %v994
    %vm1015 = vcmask 31744
    %v1016 = vsel %vm1015, %v1014, %v997
    %vm1017 = vcmask 39936
    %v1018 = vsel %vm1017, %v1016, %v1000
    %vm1019 = vcmask 48128
    %v1020 = vsel %vm1019, %v1018, %v1003
    %vm1021 = vcmask 56320
    %v1022 = vsel %vm1021, %v1020, %v1007
    %vm1023 = vcmask 64512
    %1024 = vst.msk [vmem:[#allocation11] sm:$0xff] %vm1023, %v1022
    %1025 = vst.msk [vmem:[#allocation2] sm:$0xff] %vm94, %v977
    %1026 = vst.msk [vmem:[#allocation3] sm:$0xff] %vm94, %v983
    %1027 = vst.msk [vmem:[#allocation4] sm:$0xff] %vm1009, %v974
    // Predicated region
    $region42: #{tpu_custom_call.1} parent=1 // pred_check
      _
    $region43: #{tpu_custom_call.1} parent=1 // pred_check_branch
      %1029 = sbr.rel (0) target = $region45
    $region44: #{tpu_custom_call.1} parent=1 // pred_region
      %s1031 = ssub.s32 1024, 1024
      %1032 = vsyncadd [#allocation7], %s1031
      %s1033 = sshll.u32 [#allocation8], 4
      %s1034 = int_to_ptr.vmem [resolvable:$true] %s1033
      %1039 = dma.vmem_to_hbm [thread:$0]  %s1034, 1024, %s8, [#allocation7], 128, 128, 8
    $region45: #{tpu_custom_call.1} parent=1 // pred_fallthru
      _
    // Predicated region
    $region46: #{tpu_custom_call.1} parent=1 // pred_check
      _
    $region47: #{tpu_custom_call.1} parent=1 // pred_check_branch
      %1041 = sbr.rel (0) target = $region49
    $region48: #{tpu_custom_call.1} parent=1 // pred_region
      %s1043 = ssub.s32 1024, 1024
      %1044 = vsyncadd [#allocation10], %s1043
      %s1045 = sshll.u32 [#allocation9], 4
      %s1046 = int_to_ptr.vmem [resolvable:$true] %s1045
      %1051 = dma.vmem_to_hbm [thread:$0]  %s1046, 1024, %s9, [#allocation10], 128, 128, 8
    $region49: #{tpu_custom_call.1} parent=1 // pred_fallthru
      _
    // Predicated region
    $region50: #{tpu_custom_call.1} parent=1 // pred_check
      _
    $region51: #{tpu_custom_call.1} parent=1 // pred_check_branch
      %1053 = sbr.rel (0) target = $region53
    $region52: #{tpu_custom_call.1} parent=1 // pred_region
      %s1055 = ssub.s32 128, 128
      %1056 = vsyncadd [#allocation10], %s1055
      %s1058 = sshll.u32 [#allocation11], 4
      %s1059 = int_to_ptr.vmem [resolvable:$true] %s1058
      %1061 = dma.vmem_to_hbm [thread:$0]  %s1059, 128, %s10, [#allocation10]
    $region53: #{tpu_custom_call.1} parent=1 // pred_fallthru
      _
    // Predicated region
    $region54: #{tpu_custom_call.1} parent=1 // pred_check
      _
    $region55: #{tpu_custom_call.1} parent=1 // pred_check_branch
      %1063 = sbr.rel (0) target = $region57
    $region56: #{tpu_custom_call.1} parent=1 // pred_region
      %1064 = dma.done [#allocation7], 1024
    $region57: #{tpu_custom_call.1} parent=1 // pred_fallthru
      _
    // Predicated region
    $region58: #{tpu_custom_call.1} parent=1 // pred_check
      _
    $region59: #{tpu_custom_call.1} parent=1 // pred_check_branch
      %1066 = sbr.rel (0) target = $region61
    $region60: #{tpu_custom_call.1} parent=1 // pred_region
      %1067 = dma.done [#allocation10], 1024
    $region61: #{tpu_custom_call.1} parent=1 // pred_fallthru
      _
    // Predicated region
    $region62: #{tpu_custom_call.1} parent=1 // pred_check
      _
    $region63: #{tpu_custom_call.1} parent=1 // pred_check_branch
      %1069 = sbr.rel (0) target = $region65
    $region64: #{tpu_custom_call.1} parent=1 // pred_region
      %1070 = dma.done [#allocation10], 128
    $region65: #{tpu_custom_call.1} parent=1 // pred_fallthru
      _
    %1071 = vsyncpa [#allocation6], 1
    %1072 = vsyncpa [#allocation7], 1
    %1073 = vsyncpa [#allocation10], 1

</llo_original>
